<compile_context>
chip_gen: v7x
topology: tpu7x:2x2x1
jax: 0.10.0
libtpu: 0.0.40
codegen_flags: <defaults>
</compile_context>

<pallas_src>
import functools
import math

import jax
import jax.numpy as jnp
from jax import lax
from jax.experimental import pallas as pl
from jax.experimental.pallas import tpu as pltpu

_MASK_VALUE = -0.7 * float(jnp.finfo(jnp.float32).max)   # f32-safe "minus infinity"


def _vmem_limit_bytes():
    # Use most of VMEM (the old 48 MiB cap left >half of v5e/v6e's 128 MiB idle)
    # while respecting v7x's smaller 64 MiB.
    try:
        cap = pltpu.get_tpu_info().vmem_capacity_bytes
        return int(min(100 * 1024 * 1024, cap * 3 // 4))
    except Exception:
        return 48 * 1024 * 1024          # conservative fallback if query fails


def _pick_seq_tile(T):
    # Prefer MXU-filling tiles (128/256), multiples of 16 for bf16 packing;
    # fall back to the full sequence for tiny T.
    for cand in (256, 128, 64, 32, 16):
        if T % cand == 0:
            return cand
    return T


# ---------------------------------------------------------------------------
# Kernel 1: LayerNorm1 + fused QKV projection (3E columns tiled on the grid)
# ---------------------------------------------------------------------------
def _ln_qkv_kernel(x_ref, ln1w_ref, ln1b_ref, wqkv_ref, bqkv_ref,
                   qkv_ref, xn_ref, *, ln_eps):
    c = pl.program_id(2)

    @pl.when(c == 0)
    def _ln():
        x = x_ref[0]                                      # (tq, E) f32
        mu = jnp.mean(x, axis=-1, keepdims=True)
        xc = x - mu
        var = jnp.mean(xc * xc, axis=-1, keepdims=True)
        xn = xc * lax.rsqrt(var + ln_eps) * ln1w_ref[0] + ln1b_ref[0]
        xn_ref[...] = xn.astype(xn_ref.dtype)             # cached bf16 MXU operand

    qkv_ref[0] = (jnp.dot(xn_ref[...], wqkv_ref[...],
                          preferred_element_type=jnp.float32)
                  + bqkv_ref[0]).astype(qkv_ref.dtype)


# ---------------------------------------------------------------------------
# Flash attention helpers (online softmax, full-width accumulator updates)
# ---------------------------------------------------------------------------
def _attn_accumulate(q_ref, k_ref, v_ref, m_ref, l_ref, acc_ref,
                     *, num_heads, head_dim, scale):
    qi = pl.program_id(1)
    ki = pl.program_id(2)
    tq = q_ref.shape[1]
    tk = k_ref.shape[1]
    H, Dh = num_heads, head_dim

    @pl.when(ki == 0)
    def _init():
        m_ref[...] = jnp.full(m_ref.shape, -jnp.inf, dtype=m_ref.dtype)
        l_ref[...] = jnp.zeros(l_ref.shape, dtype=l_ref.dtype)
        acc_ref[...] = jnp.zeros(acc_ref.shape, dtype=acc_ref.dtype)

    q_start = qi * tq
    k_start = ki * tk

    def step(masked):
        q = q_ref[0]                                      # (tq, E) bf16
        k = k_ref[0]                                      # (tk, E) bf16
        v = v_ref[0]                                      # (tk, E) bf16
        if masked:
            q_pos = q_start + lax.broadcasted_iota(jnp.int32, (tq, tk), 0)
            k_pos = k_start + lax.broadcasted_iota(jnp.int32, (tq, tk), 1)
            causal = k_pos <= q_pos

        pv_parts, alpha_parts = [], []
        # TODO(synk): for H >= 8-16 switch this static unroll to
        # lax.fori_loop(..., unroll=2) or a head-batched dot_general to bound
        # vreg live ranges.
        for h in range(H):
            sl = slice(h * Dh, (h + 1) * Dh)
            s = lax.dot_general(q[:, sl], k[:, sl], (((1,), (1,)), ((), ())),
                                preferred_element_type=jnp.float32) * scale
            if masked:
                s = jnp.where(causal, s, _MASK_VALUE)
            m_prev = m_ref[h]                             # (tq, 1)
            m_new = jnp.maximum(m_prev, jnp.max(s, axis=-1, keepdims=True))
            alpha = jnp.exp(m_prev - m_new)
            p = jnp.exp(s - m_new)                        # (tq, tk) f32
            l_ref[h] = alpha * l_ref[h] + jnp.sum(p, axis=-1, keepdims=True)
            m_ref[h] = m_new
            pv_parts.append(jnp.dot(p.astype(jnp.bfloat16), v[:, sl],
                                    preferred_element_type=jnp.float32))
            alpha_parts.append(jnp.broadcast_to(alpha, (tq, Dh)))

        # Single full lane-width (tq, E) accumulator update per KV step instead
        # of H masked 32-lane sub-stores.
        pv = jnp.concatenate(pv_parts, axis=-1)           # (tq, E)
        alpha_full = jnp.concatenate(alpha_parts, axis=-1)
        acc_ref[...] = alpha_full * acc_ref[...] + pv

    # Strictly-past KV block: no causal-mask arithmetic at all.
    @pl.when(k_start + tk - 1 <= q_start)
    def _unmasked():
        step(masked=False)

    # Diagonal KV block: needs the mask.  Fully-future blocks are skipped
    # entirely (and their DMA is avoided via the clamped KV index_map).
    @pl.when(jnp.logical_and(k_start <= q_start + tq - 1,
                             k_start + tk - 1 > q_start))
    def _diag():
        step(masked=True)


def _attn_output(x_ref, wo_ref, bo_ref, l_ref, acc_ref, *, num_heads, head_dim):
    """Normalize accumulator, apply out-projection, add residual (all f32)."""
    tq = acc_ref.shape[0]
    inv_l = jnp.concatenate(
        [jnp.broadcast_to(pl.reciprocal(l_ref[h], approx=True), (tq, head_dim))
         for h in range(num_heads)], axis=-1)             # (tq, E)
    ctx = (acc_ref[...] * inv_l).astype(jnp.bfloat16)
    attn = jnp.dot(ctx, wo_ref[...],
                   preferred_element_type=jnp.float32) + bo_ref[0]
    return x_ref[0] + attn                                # (tq, E) f32


# ---------------------------------------------------------------------------
# Kernel 2a: causal flash attention + out-proj + residual (bf16 hand-off)
# ---------------------------------------------------------------------------
def _flash_attn_kernel(x_ref, q_ref, k_ref, v_ref, wo_ref, bo_ref,
                       y_ref, m_ref, l_ref, acc_ref,
                       *, num_heads, head_dim, scale):
    _attn_accumulate(q_ref, k_ref, v_ref, m_ref, l_ref, acc_ref,
                     num_heads=num_heads, head_dim=head_dim, scale=scale)

    @pl.when(pl.program_id(2) == pl.num_programs(2) - 1)
    def _finalize():
        y = _attn_output(x_ref, wo_ref, bo_ref, l_ref, acc_ref,
                         num_heads=num_heads, head_dim=head_dim)
        y_ref[0] = y.astype(y_ref.dtype)                  # bf16 hand-off


# ---------------------------------------------------------------------------
# Kernel 2b: attention + fused LN2 + FFN epilogue (no HBM round-trip of y)
# ---------------------------------------------------------------------------
def _attn_ffn_kernel(x_ref, q_ref, k_ref, v_ref, wo_ref, bo_ref,
                     ln2w_ref, ln2b_ref, w1_ref, b1_ref, w2_ref, b2_ref,
                     out_ref, m_ref, l_ref, acc_ref,
                     *, num_heads, head_dim, scale, ln_eps):
    _attn_accumulate(q_ref, k_ref, v_ref, m_ref, l_ref, acc_ref,
                     num_heads=num_heads, head_dim=head_dim, scale=scale)

    @pl.when(pl.program_id(2) == pl.num_programs(2) - 1)
    def _finalize():
        y = _attn_output(x_ref, wo_ref, bo_ref, l_ref, acc_ref,
                         num_heads=num_heads, head_dim=head_dim)   # f32
        mu = jnp.mean(y, axis=-1, keepdims=True)
        yc = y - mu
        var = jnp.mean(yc * yc, axis=-1, keepdims=True)
        xn = (yc * lax.rsqrt(var + ln_eps) * ln2w_ref[0] + ln2b_ref[0]
              ).astype(jnp.bfloat16)
        h = jnp.dot(xn, w1_ref[...],
                    preferred_element_type=jnp.float32) + b1_ref[0]
        h = jax.nn.gelu(h, approximate=False)             # torch nn.GELU (erf)
        ffn = jnp.dot(h.astype(jnp.bfloat16), w2_ref[...],
                      preferred_element_type=jnp.float32) + b2_ref[0]
        out_ref[0] = (y + ffn).astype(out_ref.dtype)


# ---------------------------------------------------------------------------
# Kernel 3: LayerNorm2 + FFN (resident or hidden-dim-streamed weights) + residual
# ---------------------------------------------------------------------------
def _ln_ffn_kernel(y_ref, ln2w_ref, ln2b_ref, w1_ref, b1_ref, w2_ref, b2_ref,
                   out_ref, xn_ref, acc_ref, *, ln_eps):
    c = pl.program_id(2)

    @pl.when(c == 0)
    def _init():
        y = y_ref[0].astype(jnp.float32)
        mu = jnp.mean(y, axis=-1, keepdims=True)
        yc = y - mu
        var = jnp.mean(yc * yc, axis=-1, keepdims=True)
        xn = yc * lax.rsqrt(var + ln_eps) * ln2w_ref[0] + ln2b_ref[0]
        xn_ref[...] = xn.astype(xn_ref.dtype)             # cached bf16 MXU operand
        acc_ref[...] = jnp.zeros(acc_ref.shape, dtype=acc_ref.dtype)

    h = jnp.dot(xn_ref[...], w1_ref[...],
                preferred_element_type=jnp.float32) + b1_ref[0]
    h = jax.nn.gelu(h, approximate=False)
    acc_ref[...] += jnp.dot(h.astype(jnp.bfloat16), w2_ref[...],
                            preferred_element_type=jnp.float32)

    @pl.when(c == pl.num_programs(2) - 1)
    def _final():
        out_ref[0] = (y_ref[0].astype(jnp.float32) + acc_ref[...] + b2_ref[0]
                      ).astype(out_ref.dtype)


# ---------------------------------------------------------------------------
# Wrapper
# ---------------------------------------------------------------------------
def gpt_block(x, params, *, num_heads, ln_eps=1e-5, tq=None, th=None,
              fuse_ffn=None, single_buffer_weights=True):
    B, T, E = x.shape
    assert E % num_heads == 0
    Dh = E // num_heads
    (ln1w, ln1b, wqkv, bqkv, wo, bo, ln2w, ln2b, w1, b1, w2, b2) = params

    vmem_limit = _vmem_limit_bytes()

    tq = _pick_seq_tile(T) if tq is None else tq
    assert T % tq == 0
    nq = T // tq                        # KV tiles share the query tile size.

    ffn_w_bytes = 16 * E * E            # w1 + w2 in bf16
    if th is None:
        th = 4 * E if 2 * ffn_w_bytes <= vmem_limit // 2 else next(
            (c for c in (2048, 1024, 512, 256, 128) if (4 * E) % c == 0), 4 * E)
    assert (4 * E) % th == 0
    nh = (4 * E) // th

    if fuse_ffn is None:                # fuse LN2+FFN into the attention epilogue
        fuse_ffn = 2 * (ffn_w_bytes + 2 * E * E) <= vmem_limit // 2

    bf16 = jnp.bfloat16
    wqkv_b, wo_b = wqkv.astype(bf16), wo.astype(bf16)
    w1_b, w2_b = w1.astype(bf16), w2.astype(bf16)
    scale = 1.0 / math.sqrt(Dh)

    def _forward(use_buffered):
        def wspec(shape):
            # Constant-index weight/bias block: DMA'd once; single-buffer it so
            # it does not double its VMEM footprint (matters on v7x's 64 MiB).
            zeros = (0,) * len(shape)
            if use_buffered:
                return pl.BlockSpec(shape, lambda b, i, c: zeros,
                                    pipeline_mode=pl.Buffered(1))
            return pl.BlockSpec(shape, lambda b, i, c: zeros)

        # ---- kernel 1: LN1 + QKV (packed (B,T,3E) bf16, columns tiled) -------
        qkv = pl.pallas_call(
            functools.partial(_ln_qkv_kernel, ln_eps=ln_eps),
            out_shape=jax.ShapeDtypeStruct((B, T, 3 * E), bf16),
            grid_spec=pltpu.PrefetchScalarGridSpec(
                num_scalar_prefetch=0,
                grid=(B, nq, 3),
                in_specs=[
                    pl.BlockSpec((1, tq, E), lambda b, t, c: (b, t, 0)),   # x
                    wspec((1, E)),                                          # ln1 w
                    wspec((1, E)),                                          # ln1 b
                    pl.BlockSpec((E, E), lambda b, t, c: (0, c)),           # wqkv tile
                    pl.BlockSpec((1, E), lambda b, t, c: (0, c)),           # bqkv tile
                ],
                out_specs=pl.BlockSpec((1, tq, E), lambda b, t, c: (b, t, c)),
                scratch_shapes=[pltpu.VMEM((tq, E), bf16)],                 # LN1(x)
            ),
            compiler_params=pltpu.CompilerParams(
                dimension_semantics=("parallel", "parallel", "arbitrary"),
                vmem_limit_bytes=vmem_limit),
        )(x, ln1w, ln1b, wqkv_b, bqkv)

        # ---- kernel 2: causal flash attention (+ optional fused FFN) --------
        x_spec = pl.BlockSpec((1, tq, E), lambda b, qi, ki: (b, qi, 0))
        q_spec = pl.BlockSpec((1, tq, E), lambda b, qi, ki: (b, qi, 0))
        # Clamp the KV block index: fully-future KV tiles are never DMA'd
        # (their compute is skipped inside the kernel as well).
        k_spec = pl.BlockSpec((1, tq, E),
                              lambda b, qi, ki: (b, jnp.minimum(ki, qi), 1))
        v_spec = pl.BlockSpec((1, tq, E),
                              lambda b, qi, ki: (b, jnp.minimum(ki, qi), 2))
        o_spec = pl.BlockSpec((1, tq, E), lambda b, qi, ki: (b, qi, 0))
        attn_scratch = [
            pltpu.VMEM((num_heads, tq, 1), jnp.float32),   # running max
            pltpu.VMEM((num_heads, tq, 1), jnp.float32),   # running denom
            pltpu.VMEM((tq, E), jnp.float32),              # attention accumulator
        ]
        sem = ("parallel", "parallel", "arbitrary")

        if fuse_ffn:
            return pl.pallas_call(
                functools.partial(_attn_ffn_kernel, num_heads=num_heads,
                                  head_dim=Dh, scale=scale, ln_eps=ln_eps),
                out_shape=jax.ShapeDtypeStruct((B, T, E), x.dtype),
                grid_spec=pltpu.PrefetchScalarGridSpec(
                    num_scalar_prefetch=0,
                    grid=(B, nq, nq),
                    in_specs=[x_spec, q_spec, k_spec, v_spec,
                              wspec((E, E)), wspec((1, E)),            # wo, bo
                              wspec((1, E)), wspec((1, E)),            # ln2 w, b
                              wspec((E, 4 * E)), wspec((1, 4 * E)),    # w1, b1
                              wspec((4 * E, E)), wspec((1, E))],       # w2, b2
                    out_specs=o_spec,
                    scratch_shapes=attn_scratch),
                compiler_params=pltpu.CompilerParams(
                    dimension_semantics=sem, vmem_limit_bytes=vmem_limit),
            )(x, qkv, qkv, qkv, wo_b, bo, ln2w, ln2b, w1_b, b1, w2_b, b2)

        y = pl.pallas_call(
            functools.partial(_flash_attn_kernel, num_heads=num_heads,
                              head_dim=Dh, scale=scale),
            out_shape=jax.ShapeDtypeStruct((B, T, E), bf16),  # bf16 hand-off
            grid_spec=pltpu.PrefetchScalarGridSpec(
                num_scalar_prefetch=0,
                grid=(B, nq, nq),
                in_specs=[x_spec, q_spec, k_spec, v_spec,
                          wspec((E, E)), wspec((1, E))],
                out_specs=o_spec,
                scratch_shapes=attn_scratch),
            compiler_params=pltpu.CompilerParams(
                dimension_semantics=sem, vmem_limit_bytes=vmem_limit),
        )(x, qkv, qkv, qkv, wo_b, bo)

        # ---- kernel 3: LN2 + FFN (resident or hidden-streamed) + residual ----
        if nh == 1:
            w1_spec, b1_spec, w2_spec = (wspec((E, 4 * E)), wspec((1, 4 * E)),
                                         wspec((4 * E, E)))
        else:
            w1_spec = pl.BlockSpec((E, th), lambda b, t, c: (0, c))
            b1_spec = pl.BlockSpec((1, th), lambda b, t, c: (0, c))
            w2_spec = pl.BlockSpec((th, E), lambda b, t, c: (c, 0))

        return pl.pallas_call(
            functools.partial(_ln_ffn_kernel, ln_eps=ln_eps),
            out_shape=jax.ShapeDtypeStruct((B, T, E), x.dtype),
            grid_spec=pltpu.PrefetchScalarGridSpec(
                num_scalar_prefetch=0,
                grid=(B, nq, nh),
                in_specs=[pl.BlockSpec((1, tq, E), lambda b, t, c: (b, t, 0)),
                          wspec((1, E)), wspec((1, E)),
                          w1_spec, b1_spec, w2_spec, wspec((1, E))],
                out_specs=pl.BlockSpec((1, tq, E), lambda b, t, c: (b, t, 0)),
                scratch_shapes=[pltpu.VMEM((tq, E), bf16),            # LN2(y)
                                pltpu.VMEM((tq, E), jnp.float32)]),   # FFN acc
            compiler_params=pltpu.CompilerParams(
                dimension_semantics=sem, vmem_limit_bytes=vmem_limit),
        )(y, ln2w, ln2b, w1_b, b1, w2_b, b2)

    if single_buffer_weights:
        try:
            return _forward(True)
        except Exception:
            # pipeline_mode=pl.Buffered(1) is only a VMEM optimization; fall
            # back to default double-buffered weight blocks if unsupported.
            pass
    return _forward(False)


# ---------------------------------------------------------------------------
# Pure-JAX f32 reference
# ---------------------------------------------------------------------------
def gpt_block_ref(x, params, *, num_heads, ln_eps=1e-5):
    (ln1w, ln1b, wqkv, bqkv, wo, bo, ln2w, ln2b, w1, b1, w2, b2) = params
    B, T, E = x.shape
    H = num_heads
    Dh = E // H

    def ln(z, w, b):
        mu = jnp.mean(z, axis=-1, keepdims=True)
        var = jnp.mean((z - mu) ** 2, axis=-1, keepdims=True)
        return (z - mu) * jax.lax.rsqrt(var + ln_eps) * w[0] + b[0]

    xn = ln(x, ln1w, ln1b)
    qkv = xn @ wqkv + bqkv[0]
    q, k, v = jnp.split(qkv, 3, axis=-1)
    q = q.reshape(B, T, H, Dh)
    k = k.reshape(B, T, H, Dh)
    v = v.reshape(B, T, H, Dh)
    scores = jnp.einsum('bthd,bshd->bhts', q, k) / math.sqrt(Dh)
    mask = jnp.tril(jnp.ones((T, T), dtype=bool))
    scores = jnp.where(mask[None, None], scores, -1e30)
    probs = jax.nn.softmax(scores, axis=-1)
    ctx = jnp.einsum('bhts,bshd->bthd', probs, v).reshape(B, T, E)
    x = x + ctx @ wo + bo[0]

    xn2 = ln(x, ln2w, ln2b)
    h = jax.nn.gelu(xn2 @ w1 + b1[0], approximate=False) @ w2 + b2[0]
    return x + h


# ---------------------------------------------------------------------------
# Main
# ---------------------------------------------------------------------------
if __name__ == "__main__":
    # Small but lane/MXU-friendly GPT config: E multiple of 128; T gives two
    # 128-wide sequence tiles so the online softmax, causal-block skip and the
    # clamped KV DMA are all exercised.  B*nq is even (balances v7x's 2 cores).
    B, T, E, H = 2, 256, 128, 4
    key = jax.random.PRNGKey(0)
    ks = jax.random.split(key, 14)

    x = jax.random.normal(ks[0], (B, T, E), dtype=jnp.float32)

    ln1w = 1.0 + 0.1 * jax.random.normal(ks[9], (1, E), jnp.float32)
    ln1b = 0.1 * jax.random.normal(ks[10], (1, E), jnp.float32)
    ln2w = 1.0 + 0.1 * jax.random.normal(ks[11], (1, E), jnp.float32)
    ln2b = 0.1 * jax.random.normal(ks[12], (1, E), jnp.float32)

    wqkv = 0.02 * jax.random.normal(ks[1], (E, 3 * E), jnp.float32)
    bqkv = 0.02 * jax.random.normal(ks[2], (1, 3 * E), jnp.float32)
    wo = 0.02 * jax.random.normal(ks[3], (E, E), jnp.float32)
    bo = 0.02 * jax.random.normal(ks[4], (1, E), jnp.float32)
    w1 = 0.02 * jax.random.normal(ks[5], (E, 4 * E), jnp.float32)
    b1 = 0.02 * jax.random.normal(ks[6], (1, 4 * E), jnp.float32)
    w2 = 0.02 * jax.random.normal(ks[7], (4 * E, E), jnp.float32)
    b2 = 0.02 * jax.random.normal(ks[8], (1, E), jnp.float32)

    params = (ln1w, ln1b, wqkv, bqkv, wo, bo, ln2w, ln2b, w1, b1, w2, b2)
    ref = gpt_block_ref(x, params, num_heads=H)

    # Path 1 (default at this size): LN1+QKV kernel followed by one fused
    # flash-attention + out-proj + residual + LN2 + FFN + residual kernel.
    out_fused = gpt_block(x, params, num_heads=H, tq=128)
    out_fused = jax.block_until_ready(out_fused)
    assert out_fused.shape == (B, T, E)
    err_f = float(jnp.max(jnp.abs(out_fused - ref)))
    assert jnp.allclose(out_fused, ref, atol=2e-2, rtol=2e-2), \
        f"fused path mismatch vs reference (max abs err {err_f})"

    # Path 2: split LN2+FFN kernel with a bf16 y hand-off and the 4E hidden
    # dimension streamed in tiles (the fallback for weights that exceed VMEM).
    out_split = gpt_block(x, params, num_heads=H, tq=128, fuse_ffn=False, th=256)
    out_split = jax.block_until_ready(out_split)
    err_s = float(jnp.max(jnp.abs(out_split - ref)))
    assert jnp.allclose(out_split, ref, atol=2e-2, rtol=2e-2), \
        f"split path mismatch vs reference (max abs err {err_s})"

    # TODO(synk): dropout is treated as identity (eval mode); training-mode
    # dropout would need pltpu.prng_seed / pltpu.prng_random_bits in-kernel.
    print("KERNEL_OK")
</pallas_src>

<mosaic_0001>
module attributes {stable_mosaic.version = 11 : i64} {
  func.func @_ln_qkv_kernel(%arg0: i32, %arg1: i32, %arg2: i32, %arg3: memref<1x128x128xf32, #tpu.memory_space<vmem>>, %arg4: memref<1x128xf32, #tpu.memory_space<vmem>>, %arg5: memref<1x128xf32, #tpu.memory_space<vmem>>, %arg6: memref<128x128xbf16, #tpu.memory_space<vmem>>, %arg7: memref<1x128xf32, #tpu.memory_space<vmem>>, %arg8: memref<1x128x128xbf16, #tpu.memory_space<vmem>>, %arg9: memref<128x128xbf16, #tpu.memory_space<vmem>>) attributes {dimension_semantics = [#tpu.dimension_semantics<parallel>, #tpu.dimension_semantics<parallel>, #tpu.dimension_semantics<arbitrary>], iteration_bounds = array<i64: 2, 2, 3>, scalar_prefetch = 0 : i64, scratch_operands = 1 : i64, tpu.core_type = #tpu.core_type<tc>, window_params = [{transform_indices = @transform_0, window_bounds = array<i64: 1, 128, 128>}, {pipeline_mode = #tpu.pipeline_mode<synchronous>, transform_indices = @transform_1, window_bounds = array<i64: 1, 128>}, {pipeline_mode = #tpu.pipeline_mode<synchronous>, transform_indices = @transform_2, window_bounds = array<i64: 1, 128>}, {transform_indices = @transform_3, window_bounds = array<i64: 128, 128>}, {transform_indices = @transform_4, window_bounds = array<i64: 1, 128>}, {transform_indices = @transform_5, window_bounds = array<i64: 1, 128, 128>}]} {
    %c0_i32 = arith.constant 0 : i32
    %0 = arith.cmpi eq, %arg2, %c0_i32 : i32
    %1 = arith.extui %0 : i1 to i32
    %c0_i32_0 = arith.constant 0 : i32
    %2 = arith.cmpi ne, %1, %c0_i32_0 : i32
    scf.if %2 {
      %c0_9 = arith.constant 0 : index
      %c0_10 = arith.constant 0 : index
      %c0_11 = arith.constant 0 : index
      %15 = vector.load %arg3[%c0_9, %c0_10, %c0_11] : memref<1x128x128xf32, #tpu.memory_space<vmem>>, vector<1x128x128xf32>
      %16 = vector.shape_cast %15 : vector<1x128x128xf32> to vector<128x128xf32>
      %cst_12 = arith.constant dense<0.000000e+00> : vector<128xf32>
      %17 = vector.multi_reduction <add>, %16, %cst_12 [1] : vector<128x128xf32> to vector<128xf32>
      %18 = vector.shape_cast %17 : vector<128xf32> to vector<128x1xf32>
      %cst_13 = arith.constant 1.280000e+02 : f32
      %19 = vector.broadcast %cst_13 : f32 to vector<128x1xf32>
      %20 = arith.divf %18, %19 : vector<128x1xf32>
      %21 = vector.broadcast %20 : vector<128x1xf32> to vector<128x128xf32>
      %22 = arith.subf %16, %21 : vector<128x128xf32>
      %23 = arith.mulf %22, %22 : vector<128x128xf32>
      %cst_14 = arith.constant dense<0.000000e+00> : vector<128xf32>
      %24 = vector.multi_reduction <add>, %23, %cst_14 [1] : vector<128x128xf32> to vector<128xf32>
      %25 = vector.shape_cast %24 : vector<128xf32> to vector<128x1xf32>
      %cst_15 = arith.constant 1.280000e+02 : f32
      %26 = vector.broadcast %cst_15 : f32 to vector<128x1xf32>
      %27 = arith.divf %25, %26 : vector<128x1xf32>
      %cst_16 = arith.constant 9.99999974E-6 : f32
      %28 = vector.broadcast %cst_16 : f32 to vector<128x1xf32>
      %29 = arith.addf %27, %28 : vector<128x1xf32>
      %30 = math.rsqrt %29 : vector<128x1xf32>
      %31 = vector.broadcast %30 : vector<128x1xf32> to vector<128x128xf32>
      %32 = arith.mulf %22, %31 : vector<128x128xf32>
      %c0_17 = arith.constant 0 : index
      %c0_18 = arith.constant 0 : index
      %33 = vector.load %arg4[%c0_17, %c0_18] : memref<1x128xf32, #tpu.memory_space<vmem>>, vector<1x128xf32>
      %34 = vector.shape_cast %33 : vector<1x128xf32> to vector<128xf32>
      %35 = vector.shape_cast %34 : vector<128xf32> to vector<1x128xf32>
      %36 = vector.broadcast %35 : vector<1x128xf32> to vector<128x128xf32>
      %37 = arith.mulf %32, %36 : vector<128x128xf32>
      %c0_19 = arith.constant 0 : index
      %c0_20 = arith.constant 0 : index
      %38 = vector.load %arg5[%c0_19, %c0_20] : memref<1x128xf32, #tpu.memory_space<vmem>>, vector<1x128xf32>
      %39 = vector.shape_cast %38 : vector<1x128xf32> to vector<128xf32>
      %40 = vector.shape_cast %39 : vector<128xf32> to vector<1x128xf32>
      %41 = vector.broadcast %40 : vector<1x128xf32> to vector<128x128xf32>
      %42 = arith.addf %37, %41 : vector<128x128xf32>
      %43 = arith.truncf %42 : vector<128x128xf32> to vector<128x128xbf16>
      %c0_21 = arith.constant 0 : index
      %c0_22 = arith.constant 0 : index
      %44 = vector.load %arg9[%c0_21, %c0_22] : memref<128x128xbf16, #tpu.memory_space<vmem>>, vector<128x128xbf16>
      tpu.vector_store %arg9[%c0_21, %c0_22], %43 {strides = array<i32>} : memref<128x128xbf16, #tpu.memory_space<vmem>>, vector<128x128xbf16>,
    } else {
    }
    %c0 = arith.constant 0 : index
    %c0_1 = arith.constant 0 : index
    %3 = vector.load %arg9[%c0, %c0_1] : memref<128x128xbf16, #tpu.memory_space<vmem>>, vector<128x128xbf16>
    %c0_2 = arith.constant 0 : index
    %c0_3 = arith.constant 0 : index
    %4 = vector.load %arg6[%c0_2, %c0_3] : memref<128x128xbf16, #tpu.memory_space<vmem>>, vector<128x128xbf16>
    %cst = arith.constant dense<0.000000e+00> : vector<128x128xf32>
    %5 = tpu.matmul %3, %4, %cst {dimension_numbers = #tpu.dot_dimension_numbers<[1], [0], [0], [1], [0, 0, 1, 1], [], []>} : vector<128x128xbf16>, vector<128x128xbf16>, vector<128x128xf32> -> vector<128x128xf32>
    %c0_4 = arith.constant 0 : index
    %c0_5 = arith.constant 0 : index
    %6 = vector.load %arg7[%c0_4, %c0_5] : memref<1x128xf32, #tpu.memory_space<vmem>>, vector<1x128xf32>
    %7 = vector.shape_cast %6 : vector<1x128xf32> to vector<128xf32>
    %8 = vector.shape_cast %7 : vector<128xf32> to vector<1x128xf32>
    %9 = vector.broadcast %8 : vector<1x128xf32> to vector<128x128xf32>
    %10 = arith.addf %5, %9 : vector<128x128xf32>
    %11 = arith.truncf %10 : vector<128x128xf32> to vector<128x128xbf16>
    %c0_6 = arith.constant 0 : index
    %c0_7 = arith.constant 0 : index
    %c0_8 = arith.constant 0 : index
    %12 = vector.load %arg8[%c0_6, %c0_7, %c0_8] : memref<1x128x128xbf16, #tpu.memory_space<vmem>>, vector<1x128x128xbf16>
    %13 = vector.shape_cast %12 : vector<1x128x128xbf16> to vector<128x128xbf16>
    %14 = vector.shape_cast %11 : vector<128x128xbf16> to vector<1x128x128xbf16>
    tpu.vector_store %arg8[%c0_6, %c0_7, %c0_8], %14 {strides = array<i32>} : memref<1x128x128xbf16, #tpu.memory_space<vmem>>, vector<1x128x128xbf16>,
    return
  }
  func.func @transform_0(%arg0: i32, %arg1: i32, %arg2: i32) -> (i32, i32, i32) {
    %c0_i32 = arith.constant 0 : i32
    %c0_i32_0 = arith.constant 0 : i32
    return %arg0, %arg1, %c0_i32 : i32, i32, i32
  }
  func.func @transform_1(%arg0: i32, %arg1: i32, %arg2: i32) -> (i32, i32) {
    %c0_i32 = arith.constant 0 : i32
    %c0_i32_0 = arith.constant 0 : i32
    %c0_i32_1 = arith.constant 0 : i32
    return %c0_i32, %c0_i32_0 : i32, i32
  }
  func.func @transform_2(%arg0: i32, %arg1: i32, %arg2: i32) -> (i32, i32) {
    %c0_i32 = arith.constant 0 : i32
    %c0_i32_0 = arith.constant 0 : i32
    %c0_i32_1 = arith.constant 0 : i32
    return %c0_i32, %c0_i32_0 : i32, i32
  }
  func.func @transform_3(%arg0: i32, %arg1: i32, %arg2: i32) -> (i32, i32) {
    %c0_i32 = arith.constant 0 : i32
    %c0_i32_0 = arith.constant 0 : i32
    return %c0_i32, %arg2 : i32, i32
  }
  func.func @transform_4(%arg0: i32, %arg1: i32, %arg2: i32) -> (i32, i32) {
    %c0_i32 = arith.constant 0 : i32
    %c0_i32_0 = arith.constant 0 : i32
    return %c0_i32, %arg2 : i32, i32
  }
  func.func @transform_5(%arg0: i32, %arg1: i32, %arg2: i32) -> (i32, i32, i32) {
    %c0_i32 = arith.constant 0 : i32
    return %arg0, %arg1, %arg2 : i32, i32, i32
  }
}

module attributes {stable_mosaic.version = 11 : i64} {
  func.func @_ln_qkv_kernel(%arg0: i32, %arg1: i32, %arg2: i32, %arg3: memref<1x128x128xf32, #tpu.memory_space<vmem>>, %arg4: memref<1x128xf32, #tpu.memory_space<vmem>>, %arg5: memref<1x128xf32, #tpu.memory_space<vmem>>, %arg6: memref<128x128xbf16, #tpu.memory_space<vmem>>, %arg7: memref<1x128xf32, #tpu.memory_space<vmem>>, %arg8: memref<1x128x128xbf16, #tpu.memory_space<vmem>>, %arg9: memref<128x128xbf16, #tpu.memory_space<vmem>>) attributes {dimension_semantics = [#tpu.dimension_semantics<parallel>, #tpu.dimension_semantics<parallel>, #tpu.dimension_semantics<arbitrary>], iteration_bounds = array<i64: 2, 2, 3>, scalar_prefetch = 0 : i64, scratch_operands = 1 : i64, tpu.core_type = #tpu.core_type<tc>, window_params = [{transform_indices = @transform_0, window_bounds = array<i64: 1, 128, 128>}, {pipeline_mode = #tpu.pipeline_mode<synchronous>, transform_indices = @transform_1, window_bounds = array<i64: 1, 128>}, {pipeline_mode = #tpu.pipeline_mode<synchronous>, transform_indices = @transform_2, window_bounds = array<i64: 1, 128>}, {transform_indices = @transform_3, window_bounds = array<i64: 128, 128>}, {transform_indices = @transform_4, window_bounds = array<i64: 1, 128>}, {transform_indices = @transform_5, window_bounds = array<i64: 1, 128, 128>}]} {
    %c0_i32 = arith.constant 0 : i32
    %0 = arith.cmpi eq, %arg2, %c0_i32 : i32
    %1 = arith.extui %0 : i1 to i32
    %c0_i32_0 = arith.constant 0 : i32
    %2 = arith.cmpi ne, %1, %c0_i32_0 : i32
    scf.if %2 {
      %c0_9 = arith.constant 0 : index
      %c0_10 = arith.constant 0 : index
      %c0_11 = arith.constant 0 : index
      %15 = vector.load %arg3[%c0_9, %c0_10, %c0_11] : memref<1x128x128xf32, #tpu.memory_space<vmem>>, vector<1x128x128xf32>
      %16 = vector.shape_cast %15 : vector<1x128x128xf32> to vector<128x128xf32>
      %cst_12 = arith.constant dense<0.000000e+00> : vector<128xf32>
      %17 = vector.multi_reduction <add>, %16, %cst_12 [1] : vector<128x128xf32> to vector<128xf32>
      %18 = vector.shape_cast %17 : vector<128xf32> to vector<128x1xf32>
      %cst_13 = arith.constant 1.280000e+02 : f32
      %19 = vector.broadcast %cst_13 : f32 to vector<128x1xf32>
      %20 = arith.divf %18, %19 : vector<128x1xf32>
      %21 = vector.broadcast %20 : vector<128x1xf32> to vector<128x128xf32>
      %22 = arith.subf %16, %21 : vector<128x128xf32>
      %23 = arith.mulf %22, %22 : vector<128x128xf32>
      %cst_14 = arith.constant dense<0.000000e+00> : vector<128xf32>
      %24 = vector.multi_reduction <add>, %23, %cst_14 [1] : vector<128x128xf32> to vector<128xf32>
      %25 = vector.shape_cast %24 : vector<128xf32> to vector<128x1xf32>
      %cst_15 = arith.constant 1.280000e+02 : f32
      %26 = vector.broadcast %cst_15 : f32 to vector<128x1xf32>
      %27 = arith.divf %25, %26 : vector<128x1xf32>
      %cst_16 = arith.constant 9.99999974E-6 : f32
      %28 = vector.broadcast %cst_16 : f32 to vector<128x1xf32>
      %29 = arith.addf %27, %28 : vector<128x1xf32>
      %30 = math.rsqrt %29 : vector<128x1xf32>
      %31 = vector.broadcast %30 : vector<128x1xf32> to vector<128x128xf32>
      %32 = arith.mulf %22, %31 : vector<128x128xf32>
      %c0_17 = arith.constant 0 : index
      %c0_18 = arith.constant 0 : index
      %33 = vector.load %arg4[%c0_17, %c0_18] : memref<1x128xf32, #tpu.memory_space<vmem>>, vector<1x128xf32>
      %34 = vector.shape_cast %33 : vector<1x128xf32> to vector<128xf32>
      %35 = vector.shape_cast %34 : vector<128xf32> to vector<1x128xf32>
      %36 = vector.broadcast %35 : vector<1x128xf32> to vector<128x128xf32>
      %37 = arith.mulf %32, %36 : vector<128x128xf32>
      %c0_19 = arith.constant 0 : index
      %c0_20 = arith.constant 0 : index
      %38 = vector.load %arg5[%c0_19, %c0_20] : memref<1x128xf32, #tpu.memory_space<vmem>>, vector<1x128xf32>
      %39 = vector.shape_cast %38 : vector<1x128xf32> to vector<128xf32>
      %40 = vector.shape_cast %39 : vector<128xf32> to vector<1x128xf32>
      %41 = vector.broadcast %40 : vector<1x128xf32> to vector<128x128xf32>
      %42 = arith.addf %37, %41 : vector<128x128xf32>
      %43 = arith.truncf %42 : vector<128x128xf32> to vector<128x128xbf16>
      %c0_21 = arith.constant 0 : index
      %c0_22 = arith.constant 0 : index
      %44 = vector.load %arg9[%c0_21, %c0_22] : memref<128x128xbf16, #tpu.memory_space<vmem>>, vector<128x128xbf16>
      tpu.vector_store %arg9[%c0_21, %c0_22], %43 {strides = array<i32>} : memref<128x128xbf16, #tpu.memory_space<vmem>>, vector<128x128xbf16>,
    } else {
    }
    %c0 = arith.constant 0 : index
    %c0_1 = arith.constant 0 : index
    %3 = vector.load %arg9[%c0, %c0_1] : memref<128x128xbf16, #tpu.memory_space<vmem>>, vector<128x128xbf16>
    %c0_2 = arith.constant 0 : index
    %c0_3 = arith.constant 0 : index
    %4 = vector.load %arg6[%c0_2, %c0_3] : memref<128x128xbf16, #tpu.memory_space<vmem>>, vector<128x128xbf16>
    %cst = arith.constant dense<0.000000e+00> : vector<128x128xf32>
    %5 = tpu.matmul %3, %4, %cst {dimension_numbers = #tpu.dot_dimension_numbers<[1], [0], [0], [1], [0, 0, 1, 1], [], []>} : vector<128x128xbf16>, vector<128x128xbf16>, vector<128x128xf32> -> vector<128x128xf32>
    %c0_4 = arith.constant 0 : index
    %c0_5 = arith.constant 0 : index
    %6 = vector.load %arg7[%c0_4, %c0_5] : memref<1x128xf32, #tpu.memory_space<vmem>>, vector<1x128xf32>
    %7 = vector.shape_cast %6 : vector<1x128xf32> to vector<128xf32>
    %8 = vector.shape_cast %7 : vector<128xf32> to vector<1x128xf32>
    %9 = vector.broadcast %8 : vector<1x128xf32> to vector<128x128xf32>
    %10 = arith.addf %5, %9 : vector<128x128xf32>
    %11 = arith.truncf %10 : vector<128x128xf32> to vector<128x128xbf16>
    %c0_6 = arith.constant 0 : index
    %c0_7 = arith.constant 0 : index
    %c0_8 = arith.constant 0 : index
    %12 = vector.load %arg8[%c0_6, %c0_7, %c0_8] : memref<1x128x128xbf16, #tpu.memory_space<vmem>>, vector<1x128x128xbf16>
    %13 = vector.shape_cast %12 : vector<1x128x128xbf16> to vector<128x128xbf16>
    %14 = vector.shape_cast %11 : vector<128x128xbf16> to vector<1x128x128xbf16>
    tpu.vector_store %arg8[%c0_6, %c0_7, %c0_8], %14 {strides = array<i32>} : memref<1x128x128xbf16, #tpu.memory_space<vmem>>, vector<1x128x128xbf16>,
    return
  }
  func.func @transform_0(%arg0: i32, %arg1: i32, %arg2: i32) -> (i32, i32, i32) {
    %c0_i32 = arith.constant 0 : i32
    %c0_i32_0 = arith.constant 0 : i32
    return %arg0, %arg1, %c0_i32 : i32, i32, i32
  }
  func.func @transform_1(%arg0: i32, %arg1: i32, %arg2: i32) -> (i32, i32) {
    %c0_i32 = arith.constant 0 : i32
    %c0_i32_0 = arith.constant 0 : i32
    %c0_i32_1 = arith.constant 0 : i32
    return %c0_i32, %c0_i32_0 : i32, i32
  }
  func.func @transform_2(%arg0: i32, %arg1: i32, %arg2: i32) -> (i32, i32) {
    %c0_i32 = arith.constant 0 : i32
    %c0_i32_0 = arith.constant 0 : i32
    %c0_i32_1 = arith.constant 0 : i32
    return %c0_i32, %c0_i32_0 : i32, i32
  }
  func.func @transform_3(%arg0: i32, %arg1: i32, %arg2: i32) -> (i32, i32) {
    %c0_i32 = arith.constant 0 : i32
    %c0_i32_0 = arith.constant 0 : i32
    return %c0_i32, %arg2 : i32, i32
  }
  func.func @transform_4(%arg0: i32, %arg1: i32, %arg2: i32) -> (i32, i32) {
    %c0_i32 = arith.constant 0 : i32
    %c0_i32_0 = arith.constant 0 : i32
    return %c0_i32, %arg2 : i32, i32
  }
  func.func @transform_5(%arg0: i32, %arg1: i32, %arg2: i32) -> (i32, i32, i32) {
    %c0_i32 = arith.constant 0 : i32
    return %arg0, %arg1, %arg2 : i32, i32, i32
  }
}

</mosaic_0001>

<llo_original>
// kernel: tpu_custom_call.1
$region0: #{tpu_custom_call.1}
  #allocation0 [shape = 'u32[]', space=smem, size = 0x4, offset = 0x4, fixed_abs, tag = 'smem constant byte address 0x4 - core index']
  #allocation1 [shape = 'u32[144,128]{1,0:T(1,128)}', space=vmem, size = 0x12000, scoped, tag = 'internal scratch']
  #allocation2 [shape = 'bf16[128,128]{1,0:T(16,128)(2,1)}', space=vmem, size = 0x8000, scoped, tag = 'scratch operand']
  %s0 = inlined_call_operand.hbm [shape: f32[2,256,128], index: 0, kind: input, shape index: {}]
  %s1 = inlined_call_operand.vmem [shape: f32[1,128], index: 1, kind: input, shape index: {}]
  %s2 = inlined_call_operand.vmem [shape: f32[1,128], index: 2, kind: input, shape index: {}]
  %s3 = inlined_call_operand.hbm [shape: bf16[128,384], index: 3, kind: input, shape index: {}]
  %s4 = inlined_call_operand.vmem [shape: f32[1,384], index: 4, kind: input, shape index: {}]
  %s5 = inlined_call_operand.hbm [shape: bf16[2,256,384], index: 5, kind: output, shape index: {}]
  %s6 = sld [smem:[#allocation0]]
  $region65: #{tpu_custom_call.1} parent=0
    _
  %s8 = ssub.s32 1, %s6
  %s9 = scalar_select 0, %s8, %s6
  $region1: #{tpu_custom_call.1} parent=0
    #allocation3 [shape = 'u8[131072]{0}', space=vmem, size = 0x20000, scoped, tag = 'input window, operand 0']
    #allocation4 [shape = 's32[2]{0}', space=sflag, size = 0x8, scoped, tag = 'scoped memory for tpu_custom_call.1']
    #allocation5 [shape = 's32[2]{0}', space=sflag, size = 0x8, scoped, tag = 'scoped memory for tpu_custom_call.1']
    #allocation6 [shape = 'u8[65536]{0}', space=vmem, size = 0x10000, scoped, tag = 'input window, operand 3']
    #allocation7 [shape = 's32[2]{0}', space=sflag, size = 0x8, scoped, tag = 'scoped memory for tpu_custom_call.1']
    #allocation8 [shape = 'u8[65536]{0}', space=vmem, size = 0x10000, scoped, tag = 'output window, operand 0']
    %10 = vsyncpa [#allocation4], 0
    %s11 = scalar_lea.sflag [#allocation4], 1
    %12 = vsyncpa %s11, 0
    %13 = vsyncpa [#allocation7], 0
    %s14 = scalar_lea.sflag [#allocation7], 1
    %15 = vsyncpa %s14, 0
    %16 = vsyncpa [#allocation5], 0
    %s17 = scalar_lea.sflag [#allocation5], 1
    %18 = vsyncpa %s17, 0
    loop: start=0, step=1, limit=14
    $region2: #{tpu_custom_call.1} parent=1 // loop_pre_header
      _
    $region3: #{tpu_custom_call.1} parent=1 // loop_header
      %s20 = sphi 0, %s24
      %p21 = scmp.ge.s32.totalorder %s20, 14
      %s27 = sphi 0, %s46
      %s28 = sphi 0, %s42
      %s29 = sphi 0, %s38
      %s30 = sphi 0, %s27
      %s31 = sphi 0, %s28
      %s32 = sphi 0, %s29
      %s33 = sphi 0, %s30
      %s34 = sphi 0, %s31
      %s35 = sphi 0, %s32
      %s51 = sphi 0, %s53
      %s54 = sphi 0, %s51
      %s55 = sphi 0, %s54
      %s71 = sphi 0, %s55
      %s75 = sphi 0, %s75
      %s77 = sphi 0, %s75
      %s78 = sphi 0, %s77
      %s92 = sphi 0, %s78
      %s96 = sphi 0, %s96
      %s98 = sphi 0, %s96
      %s99 = sphi 0, %s98
      %s113 = sphi 0, %s99
      %s119 = sphi 0, %s121
      %s122 = sphi 0, %s119
      %s123 = sphi 0, %s122
      %s139 = sphi 0, %s123
      %s145 = sphi 0, %s147
      %s148 = sphi 0, %s145
      %s149 = sphi 0, %s148
      %s165 = sphi 0, %s149
      %s175 = sphi 0, %s177
      %s178 = sphi 0, %s175
      %s179 = sphi 0, %s178
      %s195 = sphi 0, %s179
    $region4: #{tpu_custom_call.1} parent=1 // loop_header_branch
      %23 = sbr.rel (%p21) target = $region8
    $region5: #{tpu_custom_call.1} parent=1 // loop_body
      %s25 = ssub.s32 %s20, 1
      %s26 = ssub.s32 %s20, 2
      %s36 = sadd.s32 1, %s29
      %p37 = scmp.ge.s32.totalorder %s36, 3
      %s38 = scalar_select %p37, 0, %s36
      %s39 = sadd.s32 1, %s28
      %s40 = scalar_select %p37, %s39, %s28
      %p41 = scmp.ge.s32.totalorder %s40, 2
      %s42 = scalar_select %p41, 0, %s40
      %s43 = sadd.s32 1, %s27
      %s44 = scalar_select %p41, %s43, %s27
      %p45 = scmp.ge.s32.totalorder %s44, 2
      %s46 = scalar_select %p45, 0, %s44
      %s47 = ssub.s32 %s27, %s46
      %s48 = ssub.s32 %s28, %s42
      %s49 = sor.u32 %s47, %s48
      %p50 = scmp.eq.s32.totalorder %s49, 0
      %s52 = sadd.s32 %s51, 1
      %s53 = scalar_select %p50, %s51, %s52
      %p56 = pneg %p50
      %p57 = scmp.eq.s32.totalorder %s20, 11
      %p58 = por %p56, %p57
      %p59 = scmp.ne.s32.totalorder %s51, %s54
      %p60 = scmp.eq.s32.totalorder %s20, 0
      %p61 = por %p59, %p60
      %p62 = scmp.ne.s32.totalorder %s51, %s54
      %p63 = scmp.eq.s32.totalorder %s25, 11
      %p64 = por %p62, %p63
      %p65 = scmp.ne.s32.totalorder %s54, %s55
      %p66 = scmp.eq.s32.totalorder %s25, 0
      %p67 = por %p65, %p66
      %p68 = scmp.ne.s32.totalorder %s54, %s55
      %p69 = scmp.eq.s32.totalorder %s26, 11
      %p70 = por %p68, %p69
      %p72 = scmp.ne.s32.totalorder %s55, %s71
      %p73 = scmp.eq.s32.totalorder %s26, 0
      %p74 = por %p72, %p73
      %s76 = sadd.s32 %s75, 1
      %p79 = scmp.eq.s32.totalorder %s20, 11
      %p80 = scmp.ne.s32.totalorder %s75, %s77
      %p81 = scmp.eq.s32.totalorder %s20, 0
      %p82 = por %p80, %p81
      %p83 = scmp.ne.s32.totalorder %s75, %s77
      %p84 = scmp.eq.s32.totalorder %s25, 11
      %p85 = por %p83, %p84
      %p86 = scmp.ne.s32.totalorder %s77, %s78
      %p87 = scmp.eq.s32.totalorder %s25, 0
      %p88 = por %p86, %p87
      %p89 = scmp.ne.s32.totalorder %s77, %s78
      %p90 = scmp.eq.s32.totalorder %s26, 11
      %p91 = por %p89, %p90
      %p93 = scmp.ne.s32.totalorder %s78, %s92
      %p94 = scmp.eq.s32.totalorder %s26, 0
      %p95 = por %p93, %p94
      %s97 = sadd.s32 %s96, 1
      %p100 = scmp.eq.s32.totalorder %s20, 11
      %p101 = scmp.ne.s32.totalorder %s96, %s98
      %p102 = scmp.eq.s32.totalorder %s20, 0
      %p103 = por %p101, %p102
      %p104 = scmp.ne.s32.totalorder %s96, %s98
      %p105 = scmp.eq.s32.totalorder %s25, 11
      %p106 = por %p104, %p105
      %p107 = scmp.ne.s32.totalorder %s98, %s99
      %p108 = scmp.eq.s32.totalorder %s25, 0
      %p109 = por %p107, %p108
      %p110 = scmp.ne.s32.totalorder %s98, %s99
      %p111 = scmp.eq.s32.totalorder %s26, 11
      %p112 = por %p110, %p111
      %p114 = scmp.ne.s32.totalorder %s99, %s113
      %p115 = scmp.eq.s32.totalorder %s26, 0
      %p116 = por %p114, %p115
      %s117 = ssub.s32 %s29, %s38
      %p118 = scmp.eq.s32.totalorder %s117, 0
      %s120 = sadd.s32 %s119, 1
      %s121 = scalar_select %p118, %s119, %s120
      %p124 = pneg %p118
      %p125 = scmp.eq.s32.totalorder %s20, 11
      %p126 = por %p124, %p125
      %p127 = scmp.ne.s32.totalorder %s119, %s122
      %p128 = scmp.eq.s32.totalorder %s20, 0
      %p129 = por %p127, %p128
      %p130 = scmp.ne.s32.totalorder %s119, %s122
      %p131 = scmp.eq.s32.totalorder %s25, 11
      %p132 = por %p130, %p131
      %p133 = scmp.ne.s32.totalorder %s122, %s123
      %p134 = scmp.eq.s32.totalorder %s25, 0
      %p135 = por %p133, %p134
      %p136 = scmp.ne.s32.totalorder %s122, %s123
      %p137 = scmp.eq.s32.totalorder %s26, 11
      %p138 = por %p136, %p137
      %p140 = scmp.ne.s32.totalorder %s123, %s139
      %p141 = scmp.eq.s32.totalorder %s26, 0
      %p142 = por %p140, %p141
      %s143 = ssub.s32 %s29, %s38
      %p144 = scmp.eq.s32.totalorder %s143, 0
      %s146 = sadd.s32 %s145, 1
      %s147 = scalar_select %p144, %s145, %s146
      %p150 = pneg %p144
      %p151 = scmp.eq.s32.totalorder %s20, 11
      %p152 = por %p150, %p151
      %p153 = scmp.ne.s32.totalorder %s145, %s148
      %p154 = scmp.eq.s32.totalorder %s20, 0
      %p155 = por %p153, %p154
      %p156 = scmp.ne.s32.totalorder %s145, %s148
      %p157 = scmp.eq.s32.totalorder %s25, 11
      %p158 = por %p156, %p157
      %p159 = scmp.ne.s32.totalorder %s148, %s149
      %p160 = scmp.eq.s32.totalorder %s25, 0
      %p161 = por %p159, %p160
      %p162 = scmp.ne.s32.totalorder %s148, %s149
      %p163 = scmp.eq.s32.totalorder %s26, 11
      %p164 = por %p162, %p163
      %p166 = scmp.ne.s32.totalorder %s149, %s165
      %p167 = scmp.eq.s32.totalorder %s26, 0
      %p168 = por %p166, %p167
      %s169 = ssub.s32 %s27, %s46
      %s170 = ssub.s32 %s28, %s42
      %s171 = sor.u32 %s169, %s170
      %s172 = ssub.s32 %s29, %s38
      %s173 = sor.u32 %s171, %s172
      %p174 = scmp.eq.s32.totalorder %s173, 0
      %s176 = sadd.s32 %s175, 1
      %s177 = scalar_select %p174, %s175, %s176
      %p180 = pneg %p174
      %p181 = scmp.eq.s32.totalorder %s20, 11
      %p182 = por %p180, %p181
      %p183 = scmp.ne.s32.totalorder %s175, %s178
      %p184 = scmp.eq.s32.totalorder %s20, 0
      %p185 = por %p183, %p184
      %p186 = scmp.ne.s32.totalorder %s175, %s178
      %p187 = scmp.eq.s32.totalorder %s25, 11
      %p188 = por %p186, %p187
      %p189 = scmp.ne.s32.totalorder %s178, %s179
      %p190 = scmp.eq.s32.totalorder %s25, 0
      %p191 = por %p189, %p190
      %p192 = scmp.ne.s32.totalorder %s178, %s179
      %p193 = scmp.eq.s32.totalorder %s26, 11
      %p194 = por %p192, %p193
      %p196 = scmp.ne.s32.totalorder %s179, %s195
      %p197 = scmp.eq.s32.totalorder %s26, 0
      %p198 = por %p196, %p197
      %p199 = scmp.le.s32.totalorder 1, %s20
      %p200 = scmp.lt.s32.totalorder %s20, 13
      %p201 = pnand %p199, %p200
      %p202 = pneg %p201
      // Predicated region
      $region9: #{tpu_custom_call.1} parent=5 // pred_check
        _
      $region10: #{tpu_custom_call.1} parent=5 // pred_check_branch
        %204 = sbr.rel (%p201) target = $region12
      $region11: #{tpu_custom_call.1} parent=5 // pred_region
        %s205 = ssub.s32 %s20, 1
        // Predicated region
        $region13: #{tpu_custom_call.1} parent=11 // pred_check
          %p206 = pneg %p88
        $region14: #{tpu_custom_call.1} parent=11 // pred_check_branch
          %208 = sbr.rel (%p206) target = $region16
        $region15: #{tpu_custom_call.1} parent=11 // pred_region
          _
        $region16: #{tpu_custom_call.1} parent=11 // pred_fallthru
          _
        // Predicated region
        $region17: #{tpu_custom_call.1} parent=11 // pred_check
          %p209 = pneg %p109
        $region18: #{tpu_custom_call.1} parent=11 // pred_check_branch
          %211 = sbr.rel (%p209) target = $region20
        $region19: #{tpu_custom_call.1} parent=11 // pred_region
          _
        $region20: #{tpu_custom_call.1} parent=11 // pred_fallthru
          _
      $region12: #{tpu_custom_call.1} parent=5 // pred_fallthru
        _
      %p212 = scmp.lt.s32.totalorder %s20, 12
      // Predicated region
      $region21: #{tpu_custom_call.1} parent=5 // pred_check
        %p213 = pneg %p212
      $region22: #{tpu_custom_call.1} parent=5 // pred_check_branch
        %215 = sbr.rel (%p213) target = $region24
      $region23: #{tpu_custom_call.1} parent=5 // pred_region
        // Predicated region
        $region25: #{tpu_custom_call.1} parent=23 // pred_check
          %p216 = pneg %p61
        $region26: #{tpu_custom_call.1} parent=23 // pred_check_branch
          %218 = sbr.rel (%p216) target = $region28
        $region27: #{tpu_custom_call.1} parent=23 // pred_region
          %s219 = sand.u32 %s51, 1
          %s220 = scalar_lea.sflag [#allocation4], %s219
          %s221 = sand.u32 %s51, 1
          %s222 = smul.addr %s221, 128
          %s223 = scalar_lea.vmem [#allocation3], %s222
          %s224 = smul.u32 16, %s28
          %s226 = ssub.s32 2048, 2048
          %227 = vsyncadd %s220, %s226
          %s228 = smul.addr %s27, 32
          %s229 = sadd.s32 %s224, %s228
          %s230 = smul.addr %s229, 128
          %s231 = scalar_lea.hbm %s0, %s230
          %s232 = sshll.u32 %s223, 4
          %s233 = int_to_ptr.vmem [resolvable:$true] %s232
          %238 = dma.hbm_to_vmem [thread:$0]  %s231, 2048, %s233, %s220, 128, 128, 8
        $region28: #{tpu_custom_call.1} parent=23 // pred_fallthru
          _
        // Predicated region
        $region29: #{tpu_custom_call.1} parent=23 // pred_check
          %p239 = pneg %p129
        $region30: #{tpu_custom_call.1} parent=23 // pred_check_branch
          %241 = sbr.rel (%p239) target = $region32
        $region31: #{tpu_custom_call.1} parent=23 // pred_region
          %s242 = sand.u32 %s119, 1
          %s243 = scalar_lea.sflag [#allocation7], %s242
          %s244 = sand.u32 %s119, 1
          %s245 = smul.addr %s244, 64
          %s246 = scalar_lea.vmem [#allocation6], %s245
          %s248 = ssub.s32 1024, 1024
          %249 = vsyncadd %s243, %s248
          %s250 = smul.addr %s29, 64
          %s251 = scalar_lea.hbm %s3, %s250
          %s252 = sshll.u32 %s246, 4
          %s253 = int_to_ptr.vmem [resolvable:$true] %s252
          %258 = dma.hbm_to_vmem [thread:$0]  %s251, 1024, %s253, %s243, 192, 64, 4
        $region32: #{tpu_custom_call.1} parent=23 // pred_fallthru
          _
        // Predicated region
        $region33: #{tpu_custom_call.1} parent=23 // pred_check
          %p259 = pneg %p155
        $region34: #{tpu_custom_call.1} parent=23 // pred_check_branch
          %261 = sbr.rel (%p259) target = $region36
        $region35: #{tpu_custom_call.1} parent=23 // pred_region
          %p262 = scmp.lt.s32.totalorder %s29, 2
          %s263 = scalar_select %p262, %s29, 2
          %s264 = scalar_lea.vmem %s4, %s263
        $region36: #{tpu_custom_call.1} parent=23 // pred_fallthru
          _
      $region24: #{tpu_custom_call.1} parent=5 // pred_fallthru
        _
      %p265 = scmp.le.s32.totalorder 1, %s20
      %p266 = scmp.lt.s32.totalorder %s20, 13
      %p267 = pnand %p265, %p266
      %p268 = pneg %p267
      // Predicated region
      $region37: #{tpu_custom_call.1} parent=5 // pred_check
        _
      $region38: #{tpu_custom_call.1} parent=5 // pred_check_branch
        %270 = sbr.rel (%p267) target = $region40
      $region39: #{tpu_custom_call.1} parent=5 // pred_region
        %s271 = ssub.s32 %s20, 1
        %s272 = sand.u32 %s54, 1
        %s273 = scalar_lea.sflag [#allocation4], %s272
        %s274 = sand.u32 %s54, 1
        %s275 = smul.addr %s274, 128
        %s276 = scalar_lea.vmem [#allocation3], %s275
        // Predicated region
        $region41: #{tpu_custom_call.1} parent=39 // pred_check
          %p277 = pneg %p67
        $region42: #{tpu_custom_call.1} parent=39 // pred_check_branch
          %279 = sbr.rel (%p277) target = $region44
        $region43: #{tpu_custom_call.1} parent=39 // pred_region
          %280 = dma.done %s273, 2048
        $region44: #{tpu_custom_call.1} parent=39 // pred_fallthru
          _
        %s281 = sand.u32 %s122, 1
        %s282 = scalar_lea.sflag [#allocation7], %s281
        %s283 = sand.u32 %s122, 1
        %s284 = smul.addr %s283, 64
        %s285 = scalar_lea.vmem [#allocation6], %s284
        // Predicated region
        $region45: #{tpu_custom_call.1} parent=39 // pred_check
          %p286 = pneg %p135
        $region46: #{tpu_custom_call.1} parent=39 // pred_check_branch
          %288 = sbr.rel (%p286) target = $region48
        $region47: #{tpu_custom_call.1} parent=39 // pred_region
          %289 = dma.done %s282, 1024
        $region48: #{tpu_custom_call.1} parent=39 // pred_fallthru
          _
        %s290 = sand.u32 %s54, 1
        %s291 = scalar_lea.sflag [#allocation4], %s290
        %s292 = sand.u32 %s54, 1
        %s293 = smul.addr %s292, 128
        %s294 = scalar_lea.vmem [#allocation3], %s293
        %p295 = pneg %p67
        %p296 = pneg %p64
        %p297 = pneg %p88
        %p298 = pneg %p85
        %p299 = pneg %p109
        %p300 = pneg %p106
        %s301 = sand.u32 %s122, 1
        %s302 = scalar_lea.sflag [#allocation7], %s301
        %s303 = sand.u32 %s122, 1
        %s304 = smul.addr %s303, 64
        %s305 = scalar_lea.vmem [#allocation6], %s304
        %p306 = pneg %p135
        %p307 = pneg %p132
        %p308 = scmp.lt.s32.totalorder %s32, 2
        %s309 = scalar_select %p308, %s32, 2
        %s310 = scalar_lea.vmem %s4, %s309
        %p311 = pneg %p161
        %p312 = pneg %p158
        %p313 = pneg %p191
        %p314 = pneg %p188
        %s315 = sand.u32 %s178, 1
        %s316 = scalar_lea.sflag [#allocation5], %s315
        %s317 = sand.u32 %s178, 1
        %s318 = smul.addr %s317, 64
        %s319 = scalar_lea.vmem [#allocation8], %s318
        %s320 = smul.u32 16, %s31
        %p321 = scmp.lt.s32.totalorder %s32, 2
        %s322 = scalar_select %p321, %s32, 2
        %s323 = scalar_lea.vmem %s4, %s322
        %s324 = smul.u32 16, %s31
        %p326 = scmp.eq.s32.totalorder %s32, 0
        // Predicated region
        $region49: #{tpu_custom_call.1} parent=39 // pred_check
          %p327 = pneg %p326
        $region50: #{tpu_custom_call.1} parent=39 // pred_check_branch
          %329 = sbr.rel (%p327) target = $region52
        $region51: #{tpu_custom_call.1} parent=39 // pred_region
          %v330 = vld [vmem:[%s276] sm:$0xff]
          %v331 = vld [vmem:[%s276 + $0x8] sm:$0xff]
          %v332 = vld [vmem:[%s276 + $0x10] sm:$0xff]
          %v333 = vld [vmem:[%s276 + $0x18] sm:$0xff]
          %v334 = vld [vmem:[%s276 + $0x20] sm:$0xff]
          %v335 = vld [vmem:[%s276 + $0x28] sm:$0xff]
          %v336 = vld [vmem:[%s276 + $0x30] sm:$0xff]
          %v337 = vld [vmem:[%s276 + $0x38] sm:$0xff]
          %v338 = vld [vmem:[%s276 + $0x40] sm:$0xff]
          %v339 = vld [vmem:[%s276 + $0x48] sm:$0xff]
          %v340 = vld [vmem:[%s276 + $0x50] sm:$0xff]
          %v341 = vld [vmem:[%s276 + $0x58] sm:$0xff]
          %v342 = vld [vmem:[%s276 + $0x60] sm:$0xff]
          %v343 = vld [vmem:[%s276 + $0x68] sm:$0xff]
          %v344 = vld [vmem:[%s276 + $0x70] sm:$0xff]
          %v345 = vld [vmem:[%s276 + $0x78] sm:$0xff]
          %346 = vadd.xlane.f32.xlu0 %v330
          %v347 = vpop.xlane.xlu0 %346
          %348 = vadd.xlane.f32.xlu0 %v331
          %v349 = vpop.xlane.xlu0 %348
          %350 = vadd.xlane.f32.xlu0 %v332
          %v351 = vpop.xlane.xlu0 %350
          %352 = vadd.xlane.f32.xlu0 %v333
          %v353 = vpop.xlane.xlu0 %352
          %354 = vadd.xlane.f32.xlu0 %v334
          %v355 = vpop.xlane.xlu0 %354
          %356 = vadd.xlane.f32.xlu0 %v335
          %v357 = vpop.xlane.xlu0 %356
          %358 = vadd.xlane.f32.xlu0 %v336
          %v359 = vpop.xlane.xlu0 %358
          %360 = vadd.xlane.f32.xlu0 %v337
          %v361 = vpop.xlane.xlu0 %360
          %362 = vadd.xlane.f32.xlu0 %v338
          %v363 = vpop.xlane.xlu0 %362
          %364 = vadd.xlane.f32.xlu0 %v339
          %v365 = vpop.xlane.xlu0 %364
          %366 = vadd.xlane.f32.xlu0 %v340
          %v367 = vpop.xlane.xlu0 %366
          %368 = vadd.xlane.f32.xlu0 %v341
          %v369 = vpop.xlane.xlu0 %368
          %370 = vadd.xlane.f32.xlu0 %v342
          %v371 = vpop.xlane.xlu0 %370
          %372 = vadd.xlane.f32.xlu0 %v343
          %v373 = vpop.xlane.xlu0 %372
          %374 = vadd.xlane.f32.xlu0 %v344
          %v375 = vpop.xlane.xlu0 %374
          %376 = vadd.xlane.f32.xlu0 %v345
          %v377 = vpop.xlane.xlu0 %376
          %v378 = vrcp.pop 128.0
          %v379 = vmul.f32 %v347, %v378
          %v380 = vmul.f32 %v349, %v378
          %v381 = vmul.f32 %v351, %v378
          %v382 = vmul.f32 %v353, %v378
          %v383 = vmul.f32 %v355, %v378
          %v384 = vmul.f32 %v357, %v378
          %v385 = vmul.f32 %v359, %v378
          %v386 = vmul.f32 %v361, %v378
          %v387 = vmul.f32 %v363, %v378
          %v388 = vmul.f32 %v365, %v378
          %v389 = vmul.f32 %v367, %v378
          %v390 = vmul.f32 %v369, %v378
          %v391 = vmul.f32 %v371, %v378
          %v392 = vmul.f32 %v373, %v378
          %v393 = vmul.f32 %v375, %v378
          %v394 = vmul.f32 %v377, %v378
          %v395 = vsub.f32 %v330, %v379
          %v396 = vsub.f32 %v331, %v380
          %v397 = vsub.f32 %v332, %v381
          %v398 = vsub.f32 %v333, %v382
          %v399 = vsub.f32 %v334, %v383
          %v400 = vsub.f32 %v335, %v384
          %v401 = vsub.f32 %v336, %v385
          %v402 = vsub.f32 %v337, %v386
          %v403 = vsub.f32 %v338, %v387
          %v404 = vsub.f32 %v339, %v388
          %v405 = vsub.f32 %v340, %v389
          %v406 = vsub.f32 %v341, %v390
          %v407 = vsub.f32 %v342, %v391
          %v408 = vsub.f32 %v343, %v392
          %v409 = vsub.f32 %v344, %v393
          %v410 = vsub.f32 %v345, %v394
          %v411 = vmul.f32 %v395, %v395
          %v412 = vmul.f32 %v396, %v396
          %v413 = vmul.f32 %v397, %v397
          %v414 = vmul.f32 %v398, %v398
          %v415 = vmul.f32 %v399, %v399
          %v416 = vmul.f32 %v400, %v400
          %v417 = vmul.f32 %v401, %v401
          %v418 = vmul.f32 %v402, %v402
          %v419 = vmul.f32 %v403, %v403
          %v420 = vmul.f32 %v404, %v404
          %v421 = vmul.f32 %v405, %v405
          %v422 = vmul.f32 %v406, %v406
          %v423 = vmul.f32 %v407, %v407
          %v424 = vmul.f32 %v408, %v408
          %v425 = vmul.f32 %v409, %v409
          %v426 = vmul.f32 %v410, %v410
          %427 = vadd.xlane.f32.xlu0 %v411
          %v428 = vpop.xlane.xlu0 %427
          %429 = vadd.xlane.f32.xlu0 %v412
          %v430 = vpop.xlane.xlu0 %429
          %431 = vadd.xlane.f32.xlu0 %v413
          %v432 = vpop.xlane.xlu0 %431
          %433 = vadd.xlane.f32.xlu0 %v414
          %v434 = vpop.xlane.xlu0 %433
          %435 = vadd.xlane.f32.xlu0 %v415
          %v436 = vpop.xlane.xlu0 %435
          %437 = vadd.xlane.f32.xlu0 %v416
          %v438 = vpop.xlane.xlu0 %437
          %439 = vadd.xlane.f32.xlu0 %v417
          %v440 = vpop.xlane.xlu0 %439
          %441 = vadd.xlane.f32.xlu0 %v418
          %v442 = vpop.xlane.xlu0 %441
          %443 = vadd.xlane.f32.xlu0 %v419
          %v444 = vpop.xlane.xlu0 %443
          %445 = vadd.xlane.f32.xlu0 %v420
          %v446 = vpop.xlane.xlu0 %445
          %447 = vadd.xlane.f32.xlu0 %v421
          %v448 = vpop.xlane.xlu0 %447
          %449 = vadd.xlane.f32.xlu0 %v422
          %v450 = vpop.xlane.xlu0 %449
          %451 = vadd.xlane.f32.xlu0 %v423
          %v452 = vpop.xlane.xlu0 %451
          %453 = vadd.xlane.f32.xlu0 %v424
          %v454 = vpop.xlane.xlu0 %453
          %455 = vadd.xlane.f32.xlu0 %v425
          %v456 = vpop.xlane.xlu0 %455
          %457 = vadd.xlane.f32.xlu0 %v426
          %v458 = vpop.xlane.xlu0 %457
          %v459 = vmul.f32 %v428, %v378
          %v460 = vmul.f32 %v430, %v378
          %v461 = vmul.f32 %v432, %v378
          %v462 = vmul.f32 %v434, %v378
          %v463 = vmul.f32 %v436, %v378
          %v464 = vmul.f32 %v438, %v378
          %v465 = vmul.f32 %v440, %v378
          %v466 = vmul.f32 %v442, %v378
          %v467 = vmul.f32 %v444, %v378
          %v468 = vmul.f32 %v446, %v378
          %v469 = vmul.f32 %v448, %v378
          %v470 = vmul.f32 %v450, %v378
          %v471 = vmul.f32 %v452, %v378
          %v472 = vmul.f32 %v454, %v378
          %v473 = vmul.f32 %v456, %v378
          %v474 = vmul.f32 %v458, %v378
          %v475 = vadd.f32 %v459, 1e-05
          %v476 = vadd.f32 %v460, 1e-05
          %v477 = vadd.f32 %v461, 1e-05
          %v478 = vadd.f32 %v462, 1e-05
          %v479 = vadd.f32 %v463, 1e-05
          %v480 = vadd.f32 %v464, 1e-05
          %v481 = vadd.f32 %v465, 1e-05
          %v482 = vadd.f32 %v466, 1e-05
          %v483 = vadd.f32 %v467, 1e-05
          %v484 = vadd.f32 %v468, 1e-05
          %v485 = vadd.f32 %v469, 1e-05
          %v486 = vadd.f32 %v470, 1e-05
          %v487 = vadd.f32 %v471, 1e-05
          %v488 = vadd.f32 %v472, 1e-05
          %v489 = vadd.f32 %v473, 1e-05
          %v490 = vadd.f32 %v474, 1e-05
          %v491 = vrsqrt.pop %v475
          %v492 = vrsqrt.pop %v476
          %v493 = vrsqrt.pop %v477
          %v494 = vrsqrt.pop %v478
          %v495 = vrsqrt.pop %v479
          %v496 = vrsqrt.pop %v480
          %v497 = vrsqrt.pop %v481
          %v498 = vrsqrt.pop %v482
          %v499 = vrsqrt.pop %v483
          %v500 = vrsqrt.pop %v484
          %v501 = vrsqrt.pop %v485
          %v502 = vrsqrt.pop %v486
          %v503 = vrsqrt.pop %v487
          %v504 = vrsqrt.pop %v488
          %v505 = vrsqrt.pop %v489
          %v506 = vrsqrt.pop %v490
          %v507 = vmul.f32 %v395, %v491
          %v508 = vmul.f32 %v396, %v492
          %v509 = vmul.f32 %v397, %v493
          %v510 = vmul.f32 %v398, %v494
          %v511 = vmul.f32 %v399, %v495
          %v512 = vmul.f32 %v400, %v496
          %v513 = vmul.f32 %v401, %v497
          %v514 = vmul.f32 %v402, %v498
          %v515 = vmul.f32 %v403, %v499
          %v516 = vmul.f32 %v404, %v500
          %v517 = vmul.f32 %v405, %v501
          %v518 = vmul.f32 %v406, %v502
          %v519 = vmul.f32 %v407, %v503
          %v520 = vmul.f32 %v408, %v504
          %v521 = vmul.f32 %v409, %v505
          %v522 = vmul.f32 %v410, %v506
          %v523 = vld [vmem:[%s1] sm:$0x1]
          %v525 = vlaneseq
          %v526 = vshrl.u32 %v525, 7
          %v527 = vsub.s32 0, %v526
          %v528 = vrot.slane %v523, %v527
          %v530 = vmul.f32 %v507, %v528
          %v531 = vmul.f32 %v508, %v528
          %v532 = vmul.f32 %v509, %v528
          %v533 = vmul.f32 %v510, %v528
          %v534 = vmul.f32 %v511, %v528
          %v535 = vmul.f32 %v512, %v528
          %v536 = vmul.f32 %v513, %v528
          %v537 = vmul.f32 %v514, %v528
          %v538 = vmul.f32 %v515, %v528
          %v539 = vmul.f32 %v516, %v528
          %v540 = vmul.f32 %v517, %v528
          %v541 = vmul.f32 %v518, %v528
          %v542 = vmul.f32 %v519, %v528
          %v543 = vmul.f32 %v520, %v528
          %v544 = vmul.f32 %v521, %v528
          %v545 = vmul.f32 %v522, %v528
          %v546 = vld [vmem:[%s2] sm:$0x1]
          %v548 = vlaneseq
          %v549 = vshrl.u32 %v548, 7
          %v550 = vsub.s32 0, %v549
          %v551 = vrot.slane %v546, %v550
          %v553 = vadd.f32 %v530, %v551
          %v554 = vadd.f32 %v531, %v551
          %v555 = vadd.f32 %v532, %v551
          %v556 = vadd.f32 %v533, %v551
          %v557 = vadd.f32 %v534, %v551
          %v558 = vadd.f32 %v535, %v551
          %v559 = vadd.f32 %v536, %v551
          %v560 = vadd.f32 %v537, %v551
          %v561 = vadd.f32 %v538, %v551
          %v562 = vadd.f32 %v539, %v551
          %v563 = vadd.f32 %v540, %v551
          %v564 = vadd.f32 %v541, %v551
          %v565 = vadd.f32 %v542, %v551
          %v566 = vadd.f32 %v543, %v551
          %v567 = vadd.f32 %v544, %v551
          %v568 = vadd.f32 %v545, %v551
          %v569 = vpack.c.bf16 %v554, %v553
          %v570 = vpack.c.bf16 %v556, %v555
          %v571 = vpack.c.bf16 %v558, %v557
          %v572 = vpack.c.bf16 %v560, %v559
          %v573 = vpack.c.bf16 %v562, %v561
          %v574 = vpack.c.bf16 %v564, %v563
          %v575 = vpack.c.bf16 %v566, %v565
          %v576 = vpack.c.bf16 %v568, %v567
          %577 = vst [vmem:[#allocation2] sm:$0xff] %v569
          %578 = vst [vmem:[#allocation2 + $0x8] sm:$0xff] %v570
          %579 = vst [vmem:[#allocation2 + $0x10] sm:$0xff] %v571
          %580 = vst [vmem:[#allocation2 + $0x18] sm:$0xff] %v572
          %581 = vst [vmem:[#allocation2 + $0x20] sm:$0xff] %v573
          %582 = vst [vmem:[#allocation2 + $0x28] sm:$0xff] %v574
          %583 = vst [vmem:[#allocation2 + $0x30] sm:$0xff] %v575
          %584 = vst [vmem:[#allocation2 + $0x38] sm:$0xff] %v576
        $region52: #{tpu_custom_call.1} parent=39 // pred_fallthru
          _
        %v585 = vld [vmem:[#allocation2] sm:$0xff]
        %v586 = vld [vmem:[#allocation2 + $0x8] sm:$0xff]
        %v587 = vld [vmem:[#allocation2 + $0x10] sm:$0xff]
        %v588 = vld [vmem:[#allocation2 + $0x18] sm:$0xff]
        %v589 = vld [vmem:[#allocation2 + $0x20] sm:$0xff]
        %v590 = vld [vmem:[#allocation2 + $0x28] sm:$0xff]
        %v591 = vld [vmem:[#allocation2 + $0x30] sm:$0xff]
        %v592 = vld [vmem:[#allocation2 + $0x38] sm:$0xff]
        %v593 = vld [vmem:[%s285] sm:$0xf]
        %v594 = vld [vmem:[%s285 + $0x4] sm:$0xf]
        %v595 = vld [vmem:[%s285 + $0x8] sm:$0xf]
        %v596 = vld [vmem:[%s285 + $0xc] sm:$0xf]
        %v597 = vld [vmem:[%s285 + $0x10] sm:$0xf]
        %v598 = vld [vmem:[%s285 + $0x14] sm:$0xf]
        %v599 = vld [vmem:[%s285 + $0x18] sm:$0xf]
        %v600 = vld [vmem:[%s285 + $0x1c] sm:$0xf]
        %v601 = vld [vmem:[%s285 + $0x20] sm:$0xf]
        %v602 = vld [vmem:[%s285 + $0x24] sm:$0xf]
        %v603 = vld [vmem:[%s285 + $0x28] sm:$0xf]
        %v604 = vld [vmem:[%s285 + $0x2c] sm:$0xf]
        %v605 = vld [vmem:[%s285 + $0x30] sm:$0xf]
        %v606 = vld [vmem:[%s285 + $0x34] sm:$0xf]
        %v607 = vld [vmem:[%s285 + $0x38] sm:$0xf]
        %v608 = vld [vmem:[%s285 + $0x3c] sm:$0xf]
        %v609 = vld [vmem:[%s323] sm:$0x1]
        %v611 = vlaneseq
        %v612 = vshrl.u32 %v611, 7
        %v613 = vsub.s32 0, %v612
        %v614 = vrot.slane %v609, %v613
        %v632 = vunpack.c.l.b16 %v593
        %v633 = vunpack.c.l.b16 %v594
        %v634 = vunpack.c.l.b16 %v595
        %v635 = vunpack.c.l.b16 %v596
        %v636 = vunpack.c.l.b16 %v597
        %v637 = vunpack.c.l.b16 %v598
        %v638 = vunpack.c.l.b16 %v599
        %v639 = vunpack.c.l.b16 %v600
        %v640 = vunpack.c.l.b16 %v601
        %v641 = vunpack.c.l.b16 %v602
        %v642 = vunpack.c.l.b16 %v603
        %v643 = vunpack.c.l.b16 %v604
        %v644 = vunpack.c.l.b16 %v605
        %v645 = vunpack.c.l.b16 %v606
        %v646 = vunpack.c.l.b16 %v607
        %v647 = vunpack.c.l.b16 %v608
        %v648 = vpack.c.b16 %v633, %v632
        %v649 = vpack.c.b16 %v635, %v634
        %v650 = vpack.c.b16 %v637, %v636
        %v651 = vpack.c.b16 %v639, %v638
        %v652 = vpack.c.b16 %v641, %v640
        %v653 = vpack.c.b16 %v643, %v642
        %v654 = vpack.c.b16 %v645, %v644
        %v655 = vpack.c.b16 %v647, %v646
        %664 = vmatprep.subr.bf16.mxu0 0
        %665 = vmatpush1.bf16.msra.mxu0 %v648
        %666 = vmatprep.subr.bf16.mxu0 0
        %667 = vmatpush1.bf16.msra.mxu0 %v649
        %668 = vmatprep.subr.bf16.mxu0 0
        %669 = vmatpush1.bf16.msra.mxu0 %v650
        %670 = vmatprep.subr.bf16.mxu0 0
        %671 = vmatpush1.bf16.msra.mxu0 %v651
        %672 = vmatprep.subr.bf16.mxu0 0
        %673 = vmatpush1.bf16.msra.mxu0 %v652
        %674 = vmatprep.subr.bf16.mxu0 0
        %675 = vmatpush1.bf16.msra.mxu0 %v653
        %676 = vmatprep.subr.bf16.mxu0 0
        %677 = vmatpush1.bf16.msra.mxu0 %v654
        %678 = vmatprep.subr.bf16.mxu0 0
        %679 = vmatpush1.bf16.msra.mxu0 %v655
        %680 = vmatprep.subr.bf16.mxu0 0
        %681 = vmatpush1.bf16.msra.mxu0 0
        %682 = vmatprep.subr.bf16.mxu0 0
        %683 = vmatpush1.bf16.msra.mxu0 0
        %684 = vmatprep.subr.bf16.mxu0 0
        %685 = vmatpush1.bf16.msra.mxu0 0
        %686 = vmatprep.subr.bf16.mxu0 0
        %687 = vmatpush1.bf16.msra.mxu0 0
        %688 = vmatprep.subr.bf16.mxu0 0
        %689 = vmatpush1.bf16.msra.mxu0 0
        %690 = vmatprep.subr.bf16.mxu0 0
        %691 = vmatpush1.bf16.msra.mxu0 0
        %692 = vmatprep.subr.bf16.mxu0 0
        %693 = vmatpush1.bf16.msra.mxu0 0
        %694 = vmatprep.subr.bf16.mxu0 0
        %695 = vmatpush1.bf16.msra.mxu0 0
        %696 = vmatprep.mubr.bf16.mxu0 0
        %697 = vmatmul.mubr.bf16.gmra.mrb[0].mxu0 %v585
        %v698 = vpop.f32.mrb[0].mxu0
        %v699 = vadd.f32 %v614, %v698
        %v700 = vpop.f32.mrb[0].mxu0
        %v701 = vpop.f32.mrb[0].mxu0
        %v702 = vadd.f32 %v614, %v701
        %v703 = vpop.f32.mrb[0].mxu0
        %704 = vmatprep.mubr.bf16.mxu0 0
        %705 = vmatmul.mubr.bf16.gmra.mrb[0].mxu0 %v586
        %v706 = vpop.f32.mrb[0].mxu0
        %v707 = vadd.f32 %v614, %v706
        %v708 = vpop.f32.mrb[0].mxu0
        %v709 = vpop.f32.mrb[0].mxu0
        %v710 = vadd.f32 %v614, %v709
        %v711 = vpop.f32.mrb[0].mxu0
        %712 = vmatprep.mubr.bf16.mxu0 0
        %713 = vmatmul.mubr.bf16.gmra.mrb[0].mxu0 %v587
        %v714 = vpop.f32.mrb[0].mxu0
        %v715 = vadd.f32 %v614, %v714
        %v716 = vpop.f32.mrb[0].mxu0
        %v717 = vpop.f32.mrb[0].mxu0
        %v718 = vadd.f32 %v614, %v717
        %v719 = vpop.f32.mrb[0].mxu0
        %720 = vmatprep.mubr.bf16.mxu0 0
        %721 = vmatmul.mubr.bf16.gmra.mrb[0].mxu0 %v588
        %v722 = vpop.f32.mrb[0].mxu0
        %v723 = vadd.f32 %v614, %v722
        %v724 = vpop.f32.mrb[0].mxu0
        %v725 = vpop.f32.mrb[0].mxu0
        %v726 = vadd.f32 %v614, %v725
        %v727 = vpop.f32.mrb[0].mxu0
        %728 = vmatprep.mubr.bf16.mxu0 0
        %729 = vmatmul.mubr.bf16.gmra.mrb[0].mxu0 %v589
        %v730 = vpop.f32.mrb[0].mxu0
        %v731 = vadd.f32 %v614, %v730
        %v732 = vpop.f32.mrb[0].mxu0
        %v733 = vpop.f32.mrb[0].mxu0
        %v734 = vadd.f32 %v614, %v733
        %v735 = vpop.f32.mrb[0].mxu0
        %736 = vmatprep.mubr.bf16.mxu0 0
        %737 = vmatmul.mubr.bf16.gmra.mrb[0].mxu0 %v590
        %v738 = vpop.f32.mrb[0].mxu0
        %v739 = vadd.f32 %v614, %v738
        %v740 = vpop.f32.mrb[0].mxu0
        %v741 = vpop.f32.mrb[0].mxu0
        %v742 = vadd.f32 %v614, %v741
        %v743 = vpop.f32.mrb[0].mxu0
        %744 = vmatprep.mubr.bf16.mxu0 0
        %745 = vmatmul.mubr.bf16.gmra.mrb[0].mxu0 %v591
        %v746 = vpop.f32.mrb[0].mxu0
        %v747 = vadd.f32 %v614, %v746
        %v748 = vpop.f32.mrb[0].mxu0
        %v749 = vpop.f32.mrb[0].mxu0
        %v750 = vadd.f32 %v614, %v749
        %v751 = vpop.f32.mrb[0].mxu0
        %752 = vmatprep.mubr.bf16.mxu0 0
        %753 = vmatmul.mubr.bf16.gmra.mrb[0].mxu0 %v592
        %v754 = vpop.f32.mrb[0].mxu0
        %v755 = vadd.f32 %v614, %v754
        %v756 = vpop.f32.mrb[0].mxu0
        %v757 = vpop.f32.mrb[0].mxu0
        %v758 = vadd.f32 %v614, %v757
        %v759 = vpop.f32.mrb[0].mxu0
        %760 = vdwg.mxu0
        %v761 = vpack.c.bf16 %v702, %v699
        %v762 = vpack.c.bf16 %v710, %v707
        %v763 = vpack.c.bf16 %v718, %v715
        %v764 = vpack.c.bf16 %v726, %v723
        %v765 = vpack.c.bf16 %v734, %v731
        %v766 = vpack.c.bf16 %v742, %v739
        %v767 = vpack.c.bf16 %v750, %v747
        %v768 = vpack.c.bf16 %v758, %v755
        %v777 = vunpack.c.l.b16 %v761
        %v778 = vunpack.c.h.b16 %v761
        %v779 = vunpack.c.l.b16 %v762
        %v780 = vunpack.c.h.b16 %v762
        %v781 = vunpack.c.l.b16 %v763
        %v782 = vunpack.c.h.b16 %v763
        %v783 = vunpack.c.l.b16 %v764
        %v784 = vunpack.c.h.b16 %v764
        %v785 = vunpack.c.l.b16 %v765
        %v786 = vunpack.c.h.b16 %v765
        %v787 = vunpack.c.l.b16 %v766
        %v788 = vunpack.c.h.b16 %v766
        %v789 = vunpack.c.l.b16 %v767
        %v790 = vunpack.c.h.b16 %v767
        %v791 = vunpack.c.l.b16 %v768
        %v792 = vunpack.c.h.b16 %v768
        %v793 = vpack.c.b16 %v777, %v777
        %v794 = vpack.c.b16 %v778, %v778
        %v795 = vpack.c.b16 %v779, %v779
        %v796 = vpack.c.b16 %v780, %v780
        %v797 = vpack.c.b16 %v781, %v781
        %v798 = vpack.c.b16 %v782, %v782
        %v799 = vpack.c.b16 %v783, %v783
        %v800 = vpack.c.b16 %v784, %v784
        %v801 = vpack.c.b16 %v785, %v785
        %v802 = vpack.c.b16 %v786, %v786
        %v803 = vpack.c.b16 %v787, %v787
        %v804 = vpack.c.b16 %v788, %v788
        %v805 = vpack.c.b16 %v789, %v789
        %v806 = vpack.c.b16 %v790, %v790
        %v807 = vpack.c.b16 %v791, %v791
        %v808 = vpack.c.b16 %v792, %v792
        %825 = vst [vmem:[%s319] sm:$0xf] %v793
        %826 = vst [vmem:[%s319 + $0x4] sm:$0xf] %v794
        %827 = vst [vmem:[%s319 + $0x8] sm:$0xf] %v795
        %828 = vst [vmem:[%s319 + $0xc] sm:$0xf] %v796
        %829 = vst [vmem:[%s319 + $0x10] sm:$0xf] %v797
        %830 = vst [vmem:[%s319 + $0x14] sm:$0xf] %v798
        %831 = vst [vmem:[%s319 + $0x18] sm:$0xf] %v799
        %832 = vst [vmem:[%s319 + $0x1c] sm:$0xf] %v800
        %833 = vst [vmem:[%s319 + $0x20] sm:$0xf] %v801
        %834 = vst [vmem:[%s319 + $0x24] sm:$0xf] %v802
        %835 = vst [vmem:[%s319 + $0x28] sm:$0xf] %v803
        %836 = vst [vmem:[%s319 + $0x2c] sm:$0xf] %v804
        %837 = vst [vmem:[%s319 + $0x30] sm:$0xf] %v805
        %838 = vst [vmem:[%s319 + $0x34] sm:$0xf] %v806
        %839 = vst [vmem:[%s319 + $0x38] sm:$0xf] %v807
        %840 = vst [vmem:[%s319 + $0x3c] sm:$0xf] %v808
        %s841 = sand.u32 %s178, 1
        %s842 = scalar_lea.sflag [#allocation5], %s841
        %s843 = sand.u32 %s178, 1
        %s844 = smul.addr %s843, 64
        %s845 = scalar_lea.vmem [#allocation8], %s844
        // Predicated region
        $region53: #{tpu_custom_call.1} parent=39 // pred_check
          %p846 = pneg %p188
        $region54: #{tpu_custom_call.1} parent=39 // pred_check_branch
          %848 = sbr.rel (%p846) target = $region56
        $region55: #{tpu_custom_call.1} parent=39 // pred_region
          %s849 = smul.u32 16, %s31
          %s851 = ssub.s32 1024, 1024
          %852 = vsyncadd %s842, %s851
          %s853 = smul.addr %s849, 3
          %s854 = sadd.s32 %s32, %s853
          %s855 = smul.addr %s30, 96
          %s856 = sadd.s32 %s854, %s855
          %s857 = smul.addr %s856, 64
          %s858 = scalar_lea.hbm %s5, %s857
          %s859 = sshll.u32 %s845, 4
          %s860 = int_to_ptr.vmem [resolvable:$true] %s859
          %865 = dma.vmem_to_hbm [thread:$0]  %s860, 1024, %s858, %s842, 64, 192, 4
        $region56: #{tpu_custom_call.1} parent=39 // pred_fallthru
          _
      $region40: #{tpu_custom_call.1} parent=5 // pred_fallthru
        _
      %p866 = scmp.le.s32.totalorder 2, %s20
      // Predicated region
      $region57: #{tpu_custom_call.1} parent=5 // pred_check
        %p867 = pneg %p866
      $region58: #{tpu_custom_call.1} parent=5 // pred_check_branch
        %869 = sbr.rel (%p867) target = $region60
      $region59: #{tpu_custom_call.1} parent=5 // pred_region
        %s870 = ssub.s32 %s20, 2
        // Predicated region
        $region61: #{tpu_custom_call.1} parent=59 // pred_check
          %p871 = pneg %p194
        $region62: #{tpu_custom_call.1} parent=59 // pred_check_branch
          %873 = sbr.rel (%p871) target = $region64
        $region63: #{tpu_custom_call.1} parent=59 // pred_region
          %s874 = sand.u32 %s179, 1
          %s875 = scalar_lea.sflag [#allocation5], %s874
          %s876 = sand.u32 %s179, 1
          %s877 = smul.addr %s876, 64
          %s878 = scalar_lea.vmem [#allocation8], %s877
          %879 = dma.done %s875, 1024
        $region64: #{tpu_custom_call.1} parent=59 // pred_fallthru
          _
      $region60: #{tpu_custom_call.1} parent=5 // pred_fallthru
        _
    $region6: #{tpu_custom_call.1} parent=1 // loop_footer
      %s24 = sadd.s32 1, %s20
    $region7: #{tpu_custom_call.1} parent=1 // loop_footer_branch
      %19 = sbr.rel target = $region3
    $region8: #{tpu_custom_call.1} parent=1 // loop_exit
      _
    %880 = vsyncpa [#allocation4], 1
    %s881 = scalar_lea.sflag [#allocation4], 1
    %882 = vsyncpa %s881, 1
    %883 = vsyncpa [#allocation7], 1
    %s884 = scalar_lea.sflag [#allocation7], 1
    %885 = vsyncpa %s884, 1
    %886 = vsyncpa [#allocation5], 1
    %s887 = scalar_lea.sflag [#allocation5], 1
    %888 = vsyncpa %s887, 1

// kernel: tpu_custom_call.1
$region0: #{tpu_custom_call.1}
  #allocation0 [shape = 'u32[]', space=smem, size = 0x4, offset = 0x4, fixed_abs, tag = 'smem constant byte address 0x4 - core index']
  #allocation1 [shape = 'u32[144,128]{1,0:T(1,128)}', space=vmem, size = 0x12000, scoped, tag = 'internal scratch']
  #allocation2 [shape = 'bf16[128,128]{1,0:T(16,128)(2,1)}', space=vmem, size = 0x8000, scoped, tag = 'scratch operand']
  %s0 = inlined_call_operand.hbm [shape: f32[2,256,128], index: 0, kind: input, shape index: {}]
  %s1 = inlined_call_operand.vmem [shape: f32[1,128], index: 1, kind: input, shape index: {}]
  %s2 = inlined_call_operand.vmem [shape: f32[1,128], index: 2, kind: input, shape index: {}]
  %s3 = inlined_call_operand.hbm [shape: bf16[128,384], index: 3, kind: input, shape index: {}]
  %s4 = inlined_call_operand.vmem [shape: f32[1,384], index: 4, kind: input, shape index: {}]
  %s5 = inlined_call_operand.hbm [shape: bf16[2,256,384], index: 5, kind: output, shape index: {}]
  %s6 = sld [smem:[#allocation0]]
  $region65: #{tpu_custom_call.1} parent=0
    _
  %s8 = ssub.s32 1, %s6
  %s9 = scalar_select 0, %s8, %s6
  $region1: #{tpu_custom_call.1} parent=0
    #allocation3 [shape = 'u8[131072]{0}', space=vmem, size = 0x20000, scoped, tag = 'input window, operand 0']
    #allocation4 [shape = 's32[2]{0}', space=sflag, size = 0x8, scoped, tag = 'scoped memory for tpu_custom_call.1']
    #allocation5 [shape = 's32[2]{0}', space=sflag, size = 0x8, scoped, tag = 'scoped memory for tpu_custom_call.1']
    #allocation6 [shape = 'u8[65536]{0}', space=vmem, size = 0x10000, scoped, tag = 'input window, operand 3']
    #allocation7 [shape = 's32[2]{0}', space=sflag, size = 0x8, scoped, tag = 'scoped memory for tpu_custom_call.1']
    #allocation8 [shape = 'u8[65536]{0}', space=vmem, size = 0x10000, scoped, tag = 'output window, operand 0']
    %10 = vsyncpa [#allocation4], 0
    %s11 = scalar_lea.sflag [#allocation4], 1
    %12 = vsyncpa %s11, 0
    %13 = vsyncpa [#allocation7], 0
    %s14 = scalar_lea.sflag [#allocation7], 1
    %15 = vsyncpa %s14, 0
    %16 = vsyncpa [#allocation5], 0
    %s17 = scalar_lea.sflag [#allocation5], 1
    %18 = vsyncpa %s17, 0
    loop: start=0, step=1, limit=14
    $region2: #{tpu_custom_call.1} parent=1 // loop_pre_header
      _
    $region3: #{tpu_custom_call.1} parent=1 // loop_header
      %s20 = sphi 0, %s24
      %p21 = scmp.ge.s32.totalorder %s20, 14
      %s27 = sphi 0, %s46
      %s28 = sphi 0, %s42
      %s29 = sphi 0, %s38
      %s30 = sphi 0, %s27
      %s31 = sphi 0, %s28
      %s32 = sphi 0, %s29
      %s33 = sphi 0, %s30
      %s34 = sphi 0, %s31
      %s35 = sphi 0, %s32
      %s51 = sphi 0, %s53
      %s54 = sphi 0, %s51
      %s55 = sphi 0, %s54
      %s71 = sphi 0, %s55
      %s75 = sphi 0, %s75
      %s77 = sphi 0, %s75
      %s78 = sphi 0, %s77
      %s92 = sphi 0, %s78
      %s96 = sphi 0, %s96
      %s98 = sphi 0, %s96
      %s99 = sphi 0, %s98
      %s113 = sphi 0, %s99
      %s119 = sphi 0, %s121
      %s122 = sphi 0, %s119
      %s123 = sphi 0, %s122
      %s139 = sphi 0, %s123
      %s145 = sphi 0, %s147
      %s148 = sphi 0, %s145
      %s149 = sphi 0, %s148
      %s165 = sphi 0, %s149
      %s175 = sphi 0, %s177
      %s178 = sphi 0, %s175
      %s179 = sphi 0, %s178
      %s195 = sphi 0, %s179
    $region4: #{tpu_custom_call.1} parent=1 // loop_header_branch
      %23 = sbr.rel (%p21) target = $region8
    $region5: #{tpu_custom_call.1} parent=1 // loop_body
      %s25 = ssub.s32 %s20, 1
      %s26 = ssub.s32 %s20, 2
      %s36 = sadd.s32 1, %s29
      %p37 = scmp.ge.s32.totalorder %s36, 3
      %s38 = scalar_select %p37, 0, %s36
      %s39 = sadd.s32 1, %s28
      %s40 = scalar_select %p37, %s39, %s28
      %p41 = scmp.ge.s32.totalorder %s40, 2
      %s42 = scalar_select %p41, 0, %s40
      %s43 = sadd.s32 1, %s27
      %s44 = scalar_select %p41, %s43, %s27
      %p45 = scmp.ge.s32.totalorder %s44, 2
      %s46 = scalar_select %p45, 0, %s44
      %s47 = ssub.s32 %s27, %s46
      %s48 = ssub.s32 %s28, %s42
      %s49 = sor.u32 %s47, %s48
      %p50 = scmp.eq.s32.totalorder %s49, 0
      %s52 = sadd.s32 %s51, 1
      %s53 = scalar_select %p50, %s51, %s52
      %p56 = pneg %p50
      %p57 = scmp.eq.s32.totalorder %s20, 11
      %p58 = por %p56, %p57
      %p59 = scmp.ne.s32.totalorder %s51, %s54
      %p60 = scmp.eq.s32.totalorder %s20, 0
      %p61 = por %p59, %p60
      %p62 = scmp.ne.s32.totalorder %s51, %s54
      %p63 = scmp.eq.s32.totalorder %s25, 11
      %p64 = por %p62, %p63
      %p65 = scmp.ne.s32.totalorder %s54, %s55
      %p66 = scmp.eq.s32.totalorder %s25, 0
      %p67 = por %p65, %p66
      %p68 = scmp.ne.s32.totalorder %s54, %s55
      %p69 = scmp.eq.s32.totalorder %s26, 11
      %p70 = por %p68, %p69
      %p72 = scmp.ne.s32.totalorder %s55, %s71
      %p73 = scmp.eq.s32.totalorder %s26, 0
      %p74 = por %p72, %p73
      %s76 = sadd.s32 %s75, 1
      %p79 = scmp.eq.s32.totalorder %s20, 11
      %p80 = scmp.ne.s32.totalorder %s75, %s77
      %p81 = scmp.eq.s32.totalorder %s20, 0
      %p82 = por %p80, %p81
      %p83 = scmp.ne.s32.totalorder %s75, %s77
      %p84 = scmp.eq.s32.totalorder %s25, 11
      %p85 = por %p83, %p84
      %p86 = scmp.ne.s32.totalorder %s77, %s78
      %p87 = scmp.eq.s32.totalorder %s25, 0
      %p88 = por %p86, %p87
      %p89 = scmp.ne.s32.totalorder %s77, %s78
      %p90 = scmp.eq.s32.totalorder %s26, 11
      %p91 = por %p89, %p90
      %p93 = scmp.ne.s32.totalorder %s78, %s92
      %p94 = scmp.eq.s32.totalorder %s26, 0
      %p95 = por %p93, %p94
      %s97 = sadd.s32 %s96, 1
      %p100 = scmp.eq.s32.totalorder %s20, 11
      %p101 = scmp.ne.s32.totalorder %s96, %s98
      %p102 = scmp.eq.s32.totalorder %s20, 0
      %p103 = por %p101, %p102
      %p104 = scmp.ne.s32.totalorder %s96, %s98
      %p105 = scmp.eq.s32.totalorder %s25, 11
      %p106 = por %p104, %p105
      %p107 = scmp.ne.s32.totalorder %s98, %s99
      %p108 = scmp.eq.s32.totalorder %s25, 0
      %p109 = por %p107, %p108
      %p110 = scmp.ne.s32.totalorder %s98, %s99
      %p111 = scmp.eq.s32.totalorder %s26, 11
      %p112 = por %p110, %p111
      %p114 = scmp.ne.s32.totalorder %s99, %s113
      %p115 = scmp.eq.s32.totalorder %s26, 0
      %p116 = por %p114, %p115
      %s117 = ssub.s32 %s29, %s38
      %p118 = scmp.eq.s32.totalorder %s117, 0
      %s120 = sadd.s32 %s119, 1
      %s121 = scalar_select %p118, %s119, %s120
      %p124 = pneg %p118
      %p125 = scmp.eq.s32.totalorder %s20, 11
      %p126 = por %p124, %p125
      %p127 = scmp.ne.s32.totalorder %s119, %s122
      %p128 = scmp.eq.s32.totalorder %s20, 0
      %p129 = por %p127, %p128
      %p130 = scmp.ne.s32.totalorder %s119, %s122
      %p131 = scmp.eq.s32.totalorder %s25, 11
      %p132 = por %p130, %p131
      %p133 = scmp.ne.s32.totalorder %s122, %s123
      %p134 = scmp.eq.s32.totalorder %s25, 0
      %p135 = por %p133, %p134
      %p136 = scmp.ne.s32.totalorder %s122, %s123
      %p137 = scmp.eq.s32.totalorder %s26, 11
      %p138 = por %p136, %p137
      %p140 = scmp.ne.s32.totalorder %s123, %s139
      %p141 = scmp.eq.s32.totalorder %s26, 0
      %p142 = por %p140, %p141
      %s143 = ssub.s32 %s29, %s38
      %p144 = scmp.eq.s32.totalorder %s143, 0
      %s146 = sadd.s32 %s145, 1
      %s147 = scalar_select %p144, %s145, %s146
      %p150 = pneg %p144
      %p151 = scmp.eq.s32.totalorder %s20, 11
      %p152 = por %p150, %p151
      %p153 = scmp.ne.s32.totalorder %s145, %s148
      %p154 = scmp.eq.s32.totalorder %s20, 0
      %p155 = por %p153, %p154
      %p156 = scmp.ne.s32.totalorder %s145, %s148
      %p157 = scmp.eq.s32.totalorder %s25, 11
      %p158 = por %p156, %p157
      %p159 = scmp.ne.s32.totalorder %s148, %s149
      %p160 = scmp.eq.s32.totalorder %s25, 0
      %p161 = por %p159, %p160
      %p162 = scmp.ne.s32.totalorder %s148, %s149
      %p163 = scmp.eq.s32.totalorder %s26, 11
      %p164 = por %p162, %p163
      %p166 = scmp.ne.s32.totalorder %s149, %s165
      %p167 = scmp.eq.s32.totalorder %s26, 0
      %p168 = por %p166, %p167
      %s169 = ssub.s32 %s27, %s46
      %s170 = ssub.s32 %s28, %s42
      %s171 = sor.u32 %s169, %s170
      %s172 = ssub.s32 %s29, %s38
      %s173 = sor.u32 %s171, %s172
      %p174 = scmp.eq.s32.totalorder %s173, 0
      %s176 = sadd.s32 %s175, 1
      %s177 = scalar_select %p174, %s175, %s176
      %p180 = pneg %p174
      %p181 = scmp.eq.s32.totalorder %s20, 11
      %p182 = por %p180, %p181
      %p183 = scmp.ne.s32.totalorder %s175, %s178
      %p184 = scmp.eq.s32.totalorder %s20, 0
      %p185 = por %p183, %p184
      %p186 = scmp.ne.s32.totalorder %s175, %s178
      %p187 = scmp.eq.s32.totalorder %s25, 11
      %p188 = por %p186, %p187
      %p189 = scmp.ne.s32.totalorder %s178, %s179
      %p190 = scmp.eq.s32.totalorder %s25, 0
      %p191 = por %p189, %p190
      %p192 = scmp.ne.s32.totalorder %s178, %s179
      %p193 = scmp.eq.s32.totalorder %s26, 11
      %p194 = por %p192, %p193
      %p196 = scmp.ne.s32.totalorder %s179, %s195
      %p197 = scmp.eq.s32.totalorder %s26, 0
      %p198 = por %p196, %p197
      %p199 = scmp.le.s32.totalorder 1, %s20
      %p200 = scmp.lt.s32.totalorder %s20, 13
      %p201 = pnand %p199, %p200
      %p202 = pneg %p201
      // Predicated region
      $region9: #{tpu_custom_call.1} parent=5 // pred_check
        _
      $region10: #{tpu_custom_call.1} parent=5 // pred_check_branch
        %204 = sbr.rel (%p201) target = $region12
      $region11: #{tpu_custom_call.1} parent=5 // pred_region
        %s205 = ssub.s32 %s20, 1
        // Predicated region
        $region13: #{tpu_custom_call.1} parent=11 // pred_check
          %p206 = pneg %p88
        $region14: #{tpu_custom_call.1} parent=11 // pred_check_branch
          %208 = sbr.rel (%p206) target = $region16
        $region15: #{tpu_custom_call.1} parent=11 // pred_region
          _
        $region16: #{tpu_custom_call.1} parent=11 // pred_fallthru
          _
        // Predicated region
        $region17: #{tpu_custom_call.1} parent=11 // pred_check
          %p209 = pneg %p109
        $region18: #{tpu_custom_call.1} parent=11 // pred_check_branch
          %211 = sbr.rel (%p209) target = $region20
        $region19: #{tpu_custom_call.1} parent=11 // pred_region
          _
        $region20: #{tpu_custom_call.1} parent=11 // pred_fallthru
          _
      $region12: #{tpu_custom_call.1} parent=5 // pred_fallthru
        _
      %p212 = scmp.lt.s32.totalorder %s20, 12
      // Predicated region
      $region21: #{tpu_custom_call.1} parent=5 // pred_check
        %p213 = pneg %p212
      $region22: #{tpu_custom_call.1} parent=5 // pred_check_branch
        %215 = sbr.rel (%p213) target = $region24
      $region23: #{tpu_custom_call.1} parent=5 // pred_region
        // Predicated region
        $region25: #{tpu_custom_call.1} parent=23 // pred_check
          %p216 = pneg %p61
        $region26: #{tpu_custom_call.1} parent=23 // pred_check_branch
          %218 = sbr.rel (%p216) target = $region28
        $region27: #{tpu_custom_call.1} parent=23 // pred_region
          %s219 = sand.u32 %s51, 1
          %s220 = scalar_lea.sflag [#allocation4], %s219
          %s221 = sand.u32 %s51, 1
          %s222 = smul.addr %s221, 128
          %s223 = scalar_lea.vmem [#allocation3], %s222
          %s224 = smul.u32 16, %s28
          %s226 = ssub.s32 2048, 2048
          %227 = vsyncadd %s220, %s226
          %s228 = smul.addr %s27, 32
          %s229 = sadd.s32 %s224, %s228
          %s230 = smul.addr %s229, 128
          %s231 = scalar_lea.hbm %s0, %s230
          %s232 = sshll.u32 %s223, 4
          %s233 = int_to_ptr.vmem [resolvable:$true] %s232
          %238 = dma.hbm_to_vmem [thread:$0]  %s231, 2048, %s233, %s220, 128, 128, 8
        $region28: #{tpu_custom_call.1} parent=23 // pred_fallthru
          _
        // Predicated region
        $region29: #{tpu_custom_call.1} parent=23 // pred_check
          %p239 = pneg %p129
        $region30: #{tpu_custom_call.1} parent=23 // pred_check_branch
          %241 = sbr.rel (%p239) target = $region32
        $region31: #{tpu_custom_call.1} parent=23 // pred_region
          %s242 = sand.u32 %s119, 1
          %s243 = scalar_lea.sflag [#allocation7], %s242
          %s244 = sand.u32 %s119, 1
          %s245 = smul.addr %s244, 64
          %s246 = scalar_lea.vmem [#allocation6], %s245
          %s248 = ssub.s32 1024, 1024
          %249 = vsyncadd %s243, %s248
          %s250 = smul.addr %s29, 64
          %s251 = scalar_lea.hbm %s3, %s250
          %s252 = sshll.u32 %s246, 4
          %s253 = int_to_ptr.vmem [resolvable:$true] %s252
          %258 = dma.hbm_to_vmem [thread:$0]  %s251, 1024, %s253, %s243, 192, 64, 4
        $region32: #{tpu_custom_call.1} parent=23 // pred_fallthru
          _
        // Predicated region
        $region33: #{tpu_custom_call.1} parent=23 // pred_check
          %p259 = pneg %p155
        $region34: #{tpu_custom_call.1} parent=23 // pred_check_branch
          %261 = sbr.rel (%p259) target = $region36
        $region35: #{tpu_custom_call.1} parent=23 // pred_region
          %p262 = scmp.lt.s32.totalorder %s29, 2
          %s263 = scalar_select %p262, %s29, 2
          %s264 = scalar_lea.vmem %s4, %s263
        $region36: #{tpu_custom_call.1} parent=23 // pred_fallthru
          _
      $region24: #{tpu_custom_call.1} parent=5 // pred_fallthru
        _
      %p265 = scmp.le.s32.totalorder 1, %s20
      %p266 = scmp.lt.s32.totalorder %s20, 13
      %p267 = pnand %p265, %p266
      %p268 = pneg %p267
      // Predicated region
      $region37: #{tpu_custom_call.1} parent=5 // pred_check
        _
      $region38: #{tpu_custom_call.1} parent=5 // pred_check_branch
        %270 = sbr.rel (%p267) target = $region40
      $region39: #{tpu_custom_call.1} parent=5 // pred_region
        %s271 = ssub.s32 %s20, 1
        %s272 = sand.u32 %s54, 1
        %s273 = scalar_lea.sflag [#allocation4], %s272
        %s274 = sand.u32 %s54, 1
        %s275 = smul.addr %s274, 128
        %s276 = scalar_lea.vmem [#allocation3], %s275
        // Predicated region
        $region41: #{tpu_custom_call.1} parent=39 // pred_check
          %p277 = pneg %p67
        $region42: #{tpu_custom_call.1} parent=39 // pred_check_branch
          %279 = sbr.rel (%p277) target = $region44
        $region43: #{tpu_custom_call.1} parent=39 // pred_region
          %280 = dma.done %s273, 2048
        $region44: #{tpu_custom_call.1} parent=39 // pred_fallthru
          _
        %s281 = sand.u32 %s122, 1
        %s282 = scalar_lea.sflag [#allocation7], %s281
        %s283 = sand.u32 %s122, 1
        %s284 = smul.addr %s283, 64
        %s285 = scalar_lea.vmem [#allocation6], %s284
        // Predicated region
        $region45: #{tpu_custom_call.1} parent=39 // pred_check
          %p286 = pneg %p135
        $region46: #{tpu_custom_call.1} parent=39 // pred_check_branch
          %288 = sbr.rel (%p286) target = $region48
        $region47: #{tpu_custom_call.1} parent=39 // pred_region
          %289 = dma.done %s282, 1024
        $region48: #{tpu_custom_call.1} parent=39 // pred_fallthru
          _
        %s290 = sand.u32 %s54, 1
        %s291 = scalar_lea.sflag [#allocation4], %s290
        %s292 = sand.u32 %s54, 1
        %s293 = smul.addr %s292, 128
        %s294 = scalar_lea.vmem [#allocation3], %s293
        %p295 = pneg %p67
        %p296 = pneg %p64
        %p297 = pneg %p88
        %p298 = pneg %p85
        %p299 = pneg %p109
        %p300 = pneg %p106
        %s301 = sand.u32 %s122, 1
        %s302 = scalar_lea.sflag [#allocation7], %s301
        %s303 = sand.u32 %s122, 1
        %s304 = smul.addr %s303, 64
        %s305 = scalar_lea.vmem [#allocation6], %s304
        %p306 = pneg %p135
        %p307 = pneg %p132
        %p308 = scmp.lt.s32.totalorder %s32, 2
        %s309 = scalar_select %p308, %s32, 2
        %s310 = scalar_lea.vmem %s4, %s309
        %p311 = pneg %p161
        %p312 = pneg %p158
        %p313 = pneg %p191
        %p314 = pneg %p188
        %s315 = sand.u32 %s178, 1
        %s316 = scalar_lea.sflag [#allocation5], %s315
        %s317 = sand.u32 %s178, 1
        %s318 = smul.addr %s317, 64
        %s319 = scalar_lea.vmem [#allocation8], %s318
        %s320 = smul.u32 16, %s31
        %p321 = scmp.lt.s32.totalorder %s32, 2
        %s322 = scalar_select %p321, %s32, 2
        %s323 = scalar_lea.vmem %s4, %s322
        %s324 = smul.u32 16, %s31
        %p326 = scmp.eq.s32.totalorder %s32, 0
        // Predicated region
        $region49: #{tpu_custom_call.1} parent=39 // pred_check
          %p327 = pneg %p326
        $region50: #{tpu_custom_call.1} parent=39 // pred_check_branch
          %329 = sbr.rel (%p327) target = $region52
        $region51: #{tpu_custom_call.1} parent=39 // pred_region
          %v330 = vld [vmem:[%s276] sm:$0xff]
          %v331 = vld [vmem:[%s276 + $0x8] sm:$0xff]
          %v332 = vld [vmem:[%s276 + $0x10] sm:$0xff]
          %v333 = vld [vmem:[%s276 + $0x18] sm:$0xff]
          %v334 = vld [vmem:[%s276 + $0x20] sm:$0xff]
          %v335 = vld [vmem:[%s276 + $0x28] sm:$0xff]
          %v336 = vld [vmem:[%s276 + $0x30] sm:$0xff]
          %v337 = vld [vmem:[%s276 + $0x38] sm:$0xff]
          %v338 = vld [vmem:[%s276 + $0x40] sm:$0xff]
          %v339 = vld [vmem:[%s276 + $0x48] sm:$0xff]
          %v340 = vld [vmem:[%s276 + $0x50] sm:$0xff]
          %v341 = vld [vmem:[%s276 + $0x58] sm:$0xff]
          %v342 = vld [vmem:[%s276 + $0x60] sm:$0xff]
          %v343 = vld [vmem:[%s276 + $0x68] sm:$0xff]
          %v344 = vld [vmem:[%s276 + $0x70] sm:$0xff]
          %v345 = vld [vmem:[%s276 + $0x78] sm:$0xff]
          %346 = vadd.xlane.f32.xlu0 %v330
          %v347 = vpop.xlane.xlu0 %346
          %348 = vadd.xlane.f32.xlu0 %v331
          %v349 = vpop.xlane.xlu0 %348
          %350 = vadd.xlane.f32.xlu0 %v332
          %v351 = vpop.xlane.xlu0 %350
          %352 = vadd.xlane.f32.xlu0 %v333
          %v353 = vpop.xlane.xlu0 %352
          %354 = vadd.xlane.f32.xlu0 %v334
          %v355 = vpop.xlane.xlu0 %354
          %356 = vadd.xlane.f32.xlu0 %v335
          %v357 = vpop.xlane.xlu0 %356
          %358 = vadd.xlane.f32.xlu0 %v336
          %v359 = vpop.xlane.xlu0 %358
          %360 = vadd.xlane.f32.xlu0 %v337
          %v361 = vpop.xlane.xlu0 %360
          %362 = vadd.xlane.f32.xlu0 %v338
          %v363 = vpop.xlane.xlu0 %362
          %364 = vadd.xlane.f32.xlu0 %v339
          %v365 = vpop.xlane.xlu0 %364
          %366 = vadd.xlane.f32.xlu0 %v340
          %v367 = vpop.xlane.xlu0 %366
          %368 = vadd.xlane.f32.xlu0 %v341
          %v369 = vpop.xlane.xlu0 %368
          %370 = vadd.xlane.f32.xlu0 %v342
          %v371 = vpop.xlane.xlu0 %370
          %372 = vadd.xlane.f32.xlu0 %v343
          %v373 = vpop.xlane.xlu0 %372
          %374 = vadd.xlane.f32.xlu0 %v344
          %v375 = vpop.xlane.xlu0 %374
          %376 = vadd.xlane.f32.xlu0 %v345
          %v377 = vpop.xlane.xlu0 %376
          %v378 = vrcp.pop 128.0
          %v379 = vmul.f32 %v347, %v378
          %v380 = vmul.f32 %v349, %v378
          %v381 = vmul.f32 %v351, %v378
          %v382 = vmul.f32 %v353, %v378
          %v383 = vmul.f32 %v355, %v378
          %v384 = vmul.f32 %v357, %v378
          %v385 = vmul.f32 %v359, %v378
          %v386 = vmul.f32 %v361, %v378
          %v387 = vmul.f32 %v363, %v378
          %v388 = vmul.f32 %v365, %v378
          %v389 = vmul.f32 %v367, %v378
          %v390 = vmul.f32 %v369, %v378
          %v391 = vmul.f32 %v371, %v378
          %v392 = vmul.f32 %v373, %v378
          %v393 = vmul.f32 %v375, %v378
          %v394 = vmul.f32 %v377, %v378
          %v395 = vsub.f32 %v330, %v379
          %v396 = vsub.f32 %v331, %v380
          %v397 = vsub.f32 %v332, %v381
          %v398 = vsub.f32 %v333, %v382
          %v399 = vsub.f32 %v334, %v383
          %v400 = vsub.f32 %v335, %v384
          %v401 = vsub.f32 %v336, %v385
          %v402 = vsub.f32 %v337, %v386
          %v403 = vsub.f32 %v338, %v387
          %v404 = vsub.f32 %v339, %v388
          %v405 = vsub.f32 %v340, %v389
          %v406 = vsub.f32 %v341, %v390
          %v407 = vsub.f32 %v342, %v391
          %v408 = vsub.f32 %v343, %v392
          %v409 = vsub.f32 %v344, %v393
          %v410 = vsub.f32 %v345, %v394
          %v411 = vmul.f32 %v395, %v395
          %v412 = vmul.f32 %v396, %v396
          %v413 = vmul.f32 %v397, %v397
          %v414 = vmul.f32 %v398, %v398
          %v415 = vmul.f32 %v399, %v399
          %v416 = vmul.f32 %v400, %v400
          %v417 = vmul.f32 %v401, %v401
          %v418 = vmul.f32 %v402, %v402
          %v419 = vmul.f32 %v403, %v403
          %v420 = vmul.f32 %v404, %v404
          %v421 = vmul.f32 %v405, %v405
          %v422 = vmul.f32 %v406, %v406
          %v423 = vmul.f32 %v407, %v407
          %v424 = vmul.f32 %v408, %v408
          %v425 = vmul.f32 %v409, %v409
          %v426 = vmul.f32 %v410, %v410
          %427 = vadd.xlane.f32.xlu0 %v411
          %v428 = vpop.xlane.xlu0 %427
          %429 = vadd.xlane.f32.xlu0 %v412
          %v430 = vpop.xlane.xlu0 %429
          %431 = vadd.xlane.f32.xlu0 %v413
          %v432 = vpop.xlane.xlu0 %431
          %433 = vadd.xlane.f32.xlu0 %v414
          %v434 = vpop.xlane.xlu0 %433
          %435 = vadd.xlane.f32.xlu0 %v415
          %v436 = vpop.xlane.xlu0 %435
          %437 = vadd.xlane.f32.xlu0 %v416
          %v438 = vpop.xlane.xlu0 %437
          %439 = vadd.xlane.f32.xlu0 %v417
          %v440 = vpop.xlane.xlu0 %439
          %441 = vadd.xlane.f32.xlu0 %v418
          %v442 = vpop.xlane.xlu0 %441
          %443 = vadd.xlane.f32.xlu0 %v419
          %v444 = vpop.xlane.xlu0 %443
          %445 = vadd.xlane.f32.xlu0 %v420
          %v446 = vpop.xlane.xlu0 %445
          %447 = vadd.xlane.f32.xlu0 %v421
          %v448 = vpop.xlane.xlu0 %447
          %449 = vadd.xlane.f32.xlu0 %v422
          %v450 = vpop.xlane.xlu0 %449
          %451 = vadd.xlane.f32.xlu0 %v423
          %v452 = vpop.xlane.xlu0 %451
          %453 = vadd.xlane.f32.xlu0 %v424
          %v454 = vpop.xlane.xlu0 %453
          %455 = vadd.xlane.f32.xlu0 %v425
          %v456 = vpop.xlane.xlu0 %455
          %457 = vadd.xlane.f32.xlu0 %v426
          %v458 = vpop.xlane.xlu0 %457
          %v459 = vmul.f32 %v428, %v378
          %v460 = vmul.f32 %v430, %v378
          %v461 = vmul.f32 %v432, %v378
          %v462 = vmul.f32 %v434, %v378
          %v463 = vmul.f32 %v436, %v378
          %v464 = vmul.f32 %v438, %v378
          %v465 = vmul.f32 %v440, %v378
          %v466 = vmul.f32 %v442, %v378
          %v467 = vmul.f32 %v444, %v378
          %v468 = vmul.f32 %v446, %v378
          %v469 = vmul.f32 %v448, %v378
          %v470 = vmul.f32 %v450, %v378
          %v471 = vmul.f32 %v452, %v378
          %v472 = vmul.f32 %v454, %v378
          %v473 = vmul.f32 %v456, %v378
          %v474 = vmul.f32 %v458, %v378
          %v475 = vadd.f32 %v459, 1e-05
          %v476 = vadd.f32 %v460, 1e-05
          %v477 = vadd.f32 %v461, 1e-05
          %v478 = vadd.f32 %v462, 1e-05
          %v479 = vadd.f32 %v463, 1e-05
          %v480 = vadd.f32 %v464, 1e-05
          %v481 = vadd.f32 %v465, 1e-05
          %v482 = vadd.f32 %v466, 1e-05
          %v483 = vadd.f32 %v467, 1e-05
          %v484 = vadd.f32 %v468, 1e-05
          %v485 = vadd.f32 %v469, 1e-05
          %v486 = vadd.f32 %v470, 1e-05
          %v487 = vadd.f32 %v471, 1e-05
          %v488 = vadd.f32 %v472, 1e-05
          %v489 = vadd.f32 %v473, 1e-05
          %v490 = vadd.f32 %v474, 1e-05
          %v491 = vrsqrt.pop %v475
          %v492 = vrsqrt.pop %v476
          %v493 = vrsqrt.pop %v477
          %v494 = vrsqrt.pop %v478
          %v495 = vrsqrt.pop %v479
          %v496 = vrsqrt.pop %v480
          %v497 = vrsqrt.pop %v481
          %v498 = vrsqrt.pop %v482
          %v499 = vrsqrt.pop %v483
          %v500 = vrsqrt.pop %v484
          %v501 = vrsqrt.pop %v485
          %v502 = vrsqrt.pop %v486
          %v503 = vrsqrt.pop %v487
          %v504 = vrsqrt.pop %v488
          %v505 = vrsqrt.pop %v489
          %v506 = vrsqrt.pop %v490
          %v507 = vmul.f32 %v395, %v491
          %v508 = vmul.f32 %v396, %v492
          %v509 = vmul.f32 %v397, %v493
          %v510 = vmul.f32 %v398, %v494
          %v511 = vmul.f32 %v399, %v495
          %v512 = vmul.f32 %v400, %v496
          %v513 = vmul.f32 %v401, %v497
          %v514 = vmul.f32 %v402, %v498
          %v515 = vmul.f32 %v403, %v499
          %v516 = vmul.f32 %v404, %v500
          %v517 = vmul.f32 %v405, %v501
          %v518 = vmul.f32 %v406, %v502
          %v519 = vmul.f32 %v407, %v503
          %v520 = vmul.f32 %v408, %v504
          %v521 = vmul.f32 %v409, %v505
          %v522 = vmul.f32 %v410, %v506
          %v523 = vld [vmem:[%s1] sm:$0x1]
          %v525 = vlaneseq
          %v526 = vshrl.u32 %v525, 7
          %v527 = vsub.s32 0, %v526
          %v528 = vrot.slane %v523, %v527
          %v530 = vmul.f32 %v507, %v528
          %v531 = vmul.f32 %v508, %v528
          %v532 = vmul.f32 %v509, %v528
          %v533 = vmul.f32 %v510, %v528
          %v534 = vmul.f32 %v511, %v528
          %v535 = vmul.f32 %v512, %v528
          %v536 = vmul.f32 %v513, %v528
          %v537 = vmul.f32 %v514, %v528
          %v538 = vmul.f32 %v515, %v528
          %v539 = vmul.f32 %v516, %v528
          %v540 = vmul.f32 %v517, %v528
          %v541 = vmul.f32 %v518, %v528
          %v542 = vmul.f32 %v519, %v528
          %v543 = vmul.f32 %v520, %v528
          %v544 = vmul.f32 %v521, %v528
          %v545 = vmul.f32 %v522, %v528
          %v546 = vld [vmem:[%s2] sm:$0x1]
          %v548 = vlaneseq
          %v549 = vshrl.u32 %v548, 7
          %v550 = vsub.s32 0, %v549
          %v551 = vrot.slane %v546, %v550
          %v553 = vadd.f32 %v530, %v551
          %v554 = vadd.f32 %v531, %v551
          %v555 = vadd.f32 %v532, %v551
          %v556 = vadd.f32 %v533, %v551
          %v557 = vadd.f32 %v534, %v551
          %v558 = vadd.f32 %v535, %v551
          %v559 = vadd.f32 %v536, %v551
          %v560 = vadd.f32 %v537, %v551
          %v561 = vadd.f32 %v538, %v551
          %v562 = vadd.f32 %v539, %v551
          %v563 = vadd.f32 %v540, %v551
          %v564 = vadd.f32 %v541, %v551
          %v565 = vadd.f32 %v542, %v551
          %v566 = vadd.f32 %v543, %v551
          %v567 = vadd.f32 %v544, %v551
          %v568 = vadd.f32 %v545, %v551
          %v569 = vpack.c.bf16 %v554, %v553
          %v570 = vpack.c.bf16 %v556, %v555
          %v571 = vpack.c.bf16 %v558, %v557
          %v572 = vpack.c.bf16 %v560, %v559
          %v573 = vpack.c.bf16 %v562, %v561
          %v574 = vpack.c.bf16 %v564, %v563
          %v575 = vpack.c.bf16 %v566, %v565
          %v576 = vpack.c.bf16 %v568, %v567
          %577 = vst [vmem:[#allocation2] sm:$0xff] %v569
          %578 = vst [vmem:[#allocation2 + $0x8] sm:$0xff] %v570
          %579 = vst [vmem:[#allocation2 + $0x10] sm:$0xff] %v571
          %580 = vst [vmem:[#allocation2 + $0x18] sm:$0xff] %v572
          %581 = vst [vmem:[#allocation2 + $0x20] sm:$0xff] %v573
          %582 = vst [vmem:[#allocation2 + $0x28] sm:$0xff] %v574
          %583 = vst [vmem:[#allocation2 + $0x30] sm:$0xff] %v575
          %584 = vst [vmem:[#allocation2 + $0x38] sm:$0xff] %v576
        $region52: #{tpu_custom_call.1} parent=39 // pred_fallthru
          _
        %v585 = vld [vmem:[#allocation2] sm:$0xff]
        %v586 = vld [vmem:[#allocation2 + $0x8] sm:$0xff]
        %v587 = vld [vmem:[#allocation2 + $0x10] sm:$0xff]
        %v588 = vld [vmem:[#allocation2 + $0x18] sm:$0xff]
        %v589 = vld [vmem:[#allocation2 + $0x20] sm:$0xff]
        %v590 = vld [vmem:[#allocation2 + $0x28] sm:$0xff]
        %v591 = vld [vmem:[#allocation2 + $0x30] sm:$0xff]
        %v592 = vld [vmem:[#allocation2 + $0x38] sm:$0xff]
        %v593 = vld [vmem:[%s285] sm:$0xf]
        %v594 = vld [vmem:[%s285 + $0x4] sm:$0xf]
        %v595 = vld [vmem:[%s285 + $0x8] sm:$0xf]
        %v596 = vld [vmem:[%s285 + $0xc] sm:$0xf]
        %v597 = vld [vmem:[%s285 + $0x10] sm:$0xf]
        %v598 = vld [vmem:[%s285 + $0x14] sm:$0xf]
        %v599 = vld [vmem:[%s285 + $0x18] sm:$0xf]
        %v600 = vld [vmem:[%s285 + $0x1c] sm:$0xf]
        %v601 = vld [vmem:[%s285 + $0x20] sm:$0xf]
        %v602 = vld [vmem:[%s285 + $0x24] sm:$0xf]
        %v603 = vld [vmem:[%s285 + $0x28] sm:$0xf]
        %v604 = vld [vmem:[%s285 + $0x2c] sm:$0xf]
        %v605 = vld [vmem:[%s285 + $0x30] sm:$0xf]
        %v606 = vld [vmem:[%s285 + $0x34] sm:$0xf]
        %v607 = vld [vmem:[%s285 + $0x38] sm:$0xf]
        %v608 = vld [vmem:[%s285 + $0x3c] sm:$0xf]
        %v609 = vld [vmem:[%s323] sm:$0x1]
        %v611 = vlaneseq
        %v612 = vshrl.u32 %v611, 7
        %v613 = vsub.s32 0, %v612
        %v614 = vrot.slane %v609, %v613
        %v632 = vunpack.c.l.b16 %v593
        %v633 = vunpack.c.l.b16 %v594
        %v634 = vunpack.c.l.b16 %v595
        %v635 = vunpack.c.l.b16 %v596
        %v636 = vunpack.c.l.b16 %v597
        %v637 = vunpack.c.l.b16 %v598
        %v638 = vunpack.c.l.b16 %v599
        %v639 = vunpack.c.l.b16 %v600
        %v640 = vunpack.c.l.b16 %v601
        %v641 = vunpack.c.l.b16 %v602
        %v642 = vunpack.c.l.b16 %v603
        %v643 = vunpack.c.l.b16 %v604
        %v644 = vunpack.c.l.b16 %v605
        %v645 = vunpack.c.l.b16 %v606
        %v646 = vunpack.c.l.b16 %v607
        %v647 = vunpack.c.l.b16 %v608
        %v648 = vpack.c.b16 %v633, %v632
        %v649 = vpack.c.b16 %v635, %v634
        %v650 = vpack.c.b16 %v637, %v636
        %v651 = vpack.c.b16 %v639, %v638
        %v652 = vpack.c.b16 %v641, %v640
        %v653 = vpack.c.b16 %v643, %v642
        %v654 = vpack.c.b16 %v645, %v644
        %v655 = vpack.c.b16 %v647, %v646
        %664 = vmatprep.subr.bf16.mxu0 0
        %665 = vmatpush1.bf16.msra.mxu0 %v648
        %666 = vmatprep.subr.bf16.mxu0 0
        %667 = vmatpush1.bf16.msra.mxu0 %v649
        %668 = vmatprep.subr.bf16.mxu0 0
        %669 = vmatpush1.bf16.msra.mxu0 %v650
        %670 = vmatprep.subr.bf16.mxu0 0
        %671 = vmatpush1.bf16.msra.mxu0 %v651
        %672 = vmatprep.subr.bf16.mxu0 0
        %673 = vmatpush1.bf16.msra.mxu0 %v652
        %674 = vmatprep.subr.bf16.mxu0 0
        %675 = vmatpush1.bf16.msra.mxu0 %v653
        %676 = vmatprep.subr.bf16.mxu0 0
        %677 = vmatpush1.bf16.msra.mxu0 %v654
        %678 = vmatprep.subr.bf16.mxu0 0
        %679 = vmatpush1.bf16.msra.mxu0 %v655
        %680 = vmatprep.subr.bf16.mxu0 0
        %681 = vmatpush1.bf16.msra.mxu0 0
        %682 = vmatprep.subr.bf16.mxu0 0
        %683 = vmatpush1.bf16.msra.mxu0 0
        %684 = vmatprep.subr.bf16.mxu0 0
        %685 = vmatpush1.bf16.msra.mxu0 0
        %686 = vmatprep.subr.bf16.mxu0 0
        %687 = vmatpush1.bf16.msra.mxu0 0
        %688 = vmatprep.subr.bf16.mxu0 0
        %689 = vmatpush1.bf16.msra.mxu0 0
        %690 = vmatprep.subr.bf16.mxu0 0
        %691 = vmatpush1.bf16.msra.mxu0 0
        %692 = vmatprep.subr.bf16.mxu0 0
        %693 = vmatpush1.bf16.msra.mxu0 0
        %694 = vmatprep.subr.bf16.mxu0 0
        %695 = vmatpush1.bf16.msra.mxu0 0
        %696 = vmatprep.mubr.bf16.mxu0 0
        %697 = vmatmul.mubr.bf16.gmra.mrb[0].mxu0 %v585
        %v698 = vpop.f32.mrb[0].mxu0
        %v699 = vadd.f32 %v614, %v698
        %v700 = vpop.f32.mrb[0].mxu0
        %v701 = vpop.f32.mrb[0].mxu0
        %v702 = vadd.f32 %v614, %v701
        %v703 = vpop.f32.mrb[0].mxu0
        %704 = vmatprep.mubr.bf16.mxu0 0
        %705 = vmatmul.mubr.bf16.gmra.mrb[0].mxu0 %v586
        %v706 = vpop.f32.mrb[0].mxu0
        %v707 = vadd.f32 %v614, %v706
        %v708 = vpop.f32.mrb[0].mxu0
        %v709 = vpop.f32.mrb[0].mxu0
        %v710 = vadd.f32 %v614, %v709
        %v711 = vpop.f32.mrb[0].mxu0
        %712 = vmatprep.mubr.bf16.mxu0 0
        %713 = vmatmul.mubr.bf16.gmra.mrb[0].mxu0 %v587
        %v714 = vpop.f32.mrb[0].mxu0
        %v715 = vadd.f32 %v614, %v714
        %v716 = vpop.f32.mrb[0].mxu0
        %v717 = vpop.f32.mrb[0].mxu0
        %v718 = vadd.f32 %v614, %v717
        %v719 = vpop.f32.mrb[0].mxu0
        %720 = vmatprep.mubr.bf16.mxu0 0
        %721 = vmatmul.mubr.bf16.gmra.mrb[0].mxu0 %v588
        %v722 = vpop.f32.mrb[0].mxu0
        %v723 = vadd.f32 %v614, %v722
        %v724 = vpop.f32.mrb[0].mxu0
        %v725 = vpop.f32.mrb[0].mxu0
        %v726 = vadd.f32 %v614, %v725
        %v727 = vpop.f32.mrb[0].mxu0
        %728 = vmatprep.mubr.bf16.mxu0 0
        %729 = vmatmul.mubr.bf16.gmra.mrb[0].mxu0 %v589
        %v730 = vpop.f32.mrb[0].mxu0
        %v731 = vadd.f32 %v614, %v730
        %v732 = vpop.f32.mrb[0].mxu0
        %v733 = vpop.f32.mrb[0].mxu0
        %v734 = vadd.f32 %v614, %v733
        %v735 = vpop.f32.mrb[0].mxu0
        %736 = vmatprep.mubr.bf16.mxu0 0
        %737 = vmatmul.mubr.bf16.gmra.mrb[0].mxu0 %v590
        %v738 = vpop.f32.mrb[0].mxu0
        %v739 = vadd.f32 %v614, %v738
        %v740 = vpop.f32.mrb[0].mxu0
        %v741 = vpop.f32.mrb[0].mxu0
        %v742 = vadd.f32 %v614, %v741
        %v743 = vpop.f32.mrb[0].mxu0
        %744 = vmatprep.mubr.bf16.mxu0 0
        %745 = vmatmul.mubr.bf16.gmra.mrb[0].mxu0 %v591
        %v746 = vpop.f32.mrb[0].mxu0
        %v747 = vadd.f32 %v614, %v746
        %v748 = vpop.f32.mrb[0].mxu0
        %v749 = vpop.f32.mrb[0].mxu0
        %v750 = vadd.f32 %v614, %v749
        %v751 = vpop.f32.mrb[0].mxu0
        %752 = vmatprep.mubr.bf16.mxu0 0
        %753 = vmatmul.mubr.bf16.gmra.mrb[0].mxu0 %v592
        %v754 = vpop.f32.mrb[0].mxu0
        %v755 = vadd.f32 %v614, %v754
        %v756 = vpop.f32.mrb[0].mxu0
        %v757 = vpop.f32.mrb[0].mxu0
        %v758 = vadd.f32 %v614, %v757
        %v759 = vpop.f32.mrb[0].mxu0
        %760 = vdwg.mxu0
        %v761 = vpack.c.bf16 %v702, %v699
        %v762 = vpack.c.bf16 %v710, %v707
        %v763 = vpack.c.bf16 %v718, %v715
        %v764 = vpack.c.bf16 %v726, %v723
        %v765 = vpack.c.bf16 %v734, %v731
        %v766 = vpack.c.bf16 %v742, %v739
        %v767 = vpack.c.bf16 %v750, %v747
        %v768 = vpack.c.bf16 %v758, %v755
        %v777 = vunpack.c.l.b16 %v761
        %v778 = vunpack.c.h.b16 %v761
        %v779 = vunpack.c.l.b16 %v762
        %v780 = vunpack.c.h.b16 %v762
        %v781 = vunpack.c.l.b16 %v763
        %v782 = vunpack.c.h.b16 %v763
        %v783 = vunpack.c.l.b16 %v764
        %v784 = vunpack.c.h.b16 %v764
        %v785 = vunpack.c.l.b16 %v765
        %v786 = vunpack.c.h.b16 %v765
        %v787 = vunpack.c.l.b16 %v766
        %v788 = vunpack.c.h.b16 %v766
        %v789 = vunpack.c.l.b16 %v767
        %v790 = vunpack.c.h.b16 %v767
        %v791 = vunpack.c.l.b16 %v768
        %v792 = vunpack.c.h.b16 %v768
        %v793 = vpack.c.b16 %v777, %v777
        %v794 = vpack.c.b16 %v778, %v778
        %v795 = vpack.c.b16 %v779, %v779
        %v796 = vpack.c.b16 %v780, %v780
        %v797 = vpack.c.b16 %v781, %v781
        %v798 = vpack.c.b16 %v782, %v782
        %v799 = vpack.c.b16 %v783, %v783
        %v800 = vpack.c.b16 %v784, %v784
        %v801 = vpack.c.b16 %v785, %v785
        %v802 = vpack.c.b16 %v786, %v786
        %v803 = vpack.c.b16 %v787, %v787
        %v804 = vpack.c.b16 %v788, %v788
        %v805 = vpack.c.b16 %v789, %v789
        %v806 = vpack.c.b16 %v790, %v790
        %v807 = vpack.c.b16 %v791, %v791
        %v808 = vpack.c.b16 %v792, %v792
        %825 = vst [vmem:[%s319] sm:$0xf] %v793
        %826 = vst [vmem:[%s319 + $0x4] sm:$0xf] %v794
        %827 = vst [vmem:[%s319 + $0x8] sm:$0xf] %v795
        %828 = vst [vmem:[%s319 + $0xc] sm:$0xf] %v796
        %829 = vst [vmem:[%s319 + $0x10] sm:$0xf] %v797
        %830 = vst [vmem:[%s319 + $0x14] sm:$0xf] %v798
        %831 = vst [vmem:[%s319 + $0x18] sm:$0xf] %v799
        %832 = vst [vmem:[%s319 + $0x1c] sm:$0xf] %v800
        %833 = vst [vmem:[%s319 + $0x20] sm:$0xf] %v801
        %834 = vst [vmem:[%s319 + $0x24] sm:$0xf] %v802
        %835 = vst [vmem:[%s319 + $0x28] sm:$0xf] %v803
        %836 = vst [vmem:[%s319 + $0x2c] sm:$0xf] %v804
        %837 = vst [vmem:[%s319 + $0x30] sm:$0xf] %v805
        %838 = vst [vmem:[%s319 + $0x34] sm:$0xf] %v806
        %839 = vst [vmem:[%s319 + $0x38] sm:$0xf] %v807
        %840 = vst [vmem:[%s319 + $0x3c] sm:$0xf] %v808
        %s841 = sand.u32 %s178, 1
        %s842 = scalar_lea.sflag [#allocation5], %s841
        %s843 = sand.u32 %s178, 1
        %s844 = smul.addr %s843, 64
        %s845 = scalar_lea.vmem [#allocation8], %s844
        // Predicated region
        $region53: #{tpu_custom_call.1} parent=39 // pred_check
          %p846 = pneg %p188
        $region54: #{tpu_custom_call.1} parent=39 // pred_check_branch
          %848 = sbr.rel (%p846) target = $region56
        $region55: #{tpu_custom_call.1} parent=39 // pred_region
          %s849 = smul.u32 16, %s31
          %s851 = ssub.s32 1024, 1024
          %852 = vsyncadd %s842, %s851
          %s853 = smul.addr %s849, 3
          %s854 = sadd.s32 %s32, %s853
          %s855 = smul.addr %s30, 96
          %s856 = sadd.s32 %s854, %s855
          %s857 = smul.addr %s856, 64
          %s858 = scalar_lea.hbm %s5, %s857
          %s859 = sshll.u32 %s845, 4
          %s860 = int_to_ptr.vmem [resolvable:$true] %s859
          %865 = dma.vmem_to_hbm [thread:$0]  %s860, 1024, %s858, %s842, 64, 192, 4
        $region56: #{tpu_custom_call.1} parent=39 // pred_fallthru
          _
      $region40: #{tpu_custom_call.1} parent=5 // pred_fallthru
        _
      %p866 = scmp.le.s32.totalorder 2, %s20
      // Predicated region
      $region57: #{tpu_custom_call.1} parent=5 // pred_check
        %p867 = pneg %p866
      $region58: #{tpu_custom_call.1} parent=5 // pred_check_branch
        %869 = sbr.rel (%p867) target = $region60
      $region59: #{tpu_custom_call.1} parent=5 // pred_region
        %s870 = ssub.s32 %s20, 2
        // Predicated region
        $region61: #{tpu_custom_call.1} parent=59 // pred_check
          %p871 = pneg %p194
        $region62: #{tpu_custom_call.1} parent=59 // pred_check_branch
          %873 = sbr.rel (%p871) target = $region64
        $region63: #{tpu_custom_call.1} parent=59 // pred_region
          %s874 = sand.u32 %s179, 1
          %s875 = scalar_lea.sflag [#allocation5], %s874
          %s876 = sand.u32 %s179, 1
          %s877 = smul.addr %s876, 64
          %s878 = scalar_lea.vmem [#allocation8], %s877
          %879 = dma.done %s875, 1024
        $region64: #{tpu_custom_call.1} parent=59 // pred_fallthru
          _
      $region60: #{tpu_custom_call.1} parent=5 // pred_fallthru
        _
    $region6: #{tpu_custom_call.1} parent=1 // loop_footer
      %s24 = sadd.s32 1, %s20
    $region7: #{tpu_custom_call.1} parent=1 // loop_footer_branch
      %19 = sbr.rel target = $region3
    $region8: #{tpu_custom_call.1} parent=1 // loop_exit
      _
    %880 = vsyncpa [#allocation4], 1
    %s881 = scalar_lea.sflag [#allocation4], 1
    %882 = vsyncpa %s881, 1
    %883 = vsyncpa [#allocation7], 1
    %s884 = scalar_lea.sflag [#allocation7], 1
    %885 = vsyncpa %s884, 1
    %886 = vsyncpa [#allocation5], 1
    %s887 = scalar_lea.sflag [#allocation5], 1
    %888 = vsyncpa %s887, 1

</llo_original>
